<compile_context>
chip_gen: v5e
topology: v5e:2x2
jax: 0.10.0
libtpu: 0.0.40
codegen_flags: <defaults>
</compile_context>

<pallas_src>
import math

import jax
import jax.numpy as jnp
from jax import lax
from jax.experimental import pallas as pl
from jax.experimental.pallas import tpu as pltpu


def _leaky_relu(x, slope=0.2):
    return jnp.where(x > 0, x, slope * x)


def _cdiv(a, b):
    return (a + b - 1) // b


def _round_up(n, m):
    return _cdiv(n, m) * m


def _bias_offsets(din, dout):
    """Sublane start offsets (8-aligned) of b1/b2/b3/b4 in the packed column."""
    o1 = 0
    o2 = o1 + _round_up(dout, 8)
    o3 = o2 + _round_up(2 * dout, 8)
    o4 = o3 + _round_up(dout, 8)
    total = o4 + _round_up(din, 8)
    return (o1, o2, o3, o4), total


# ---------------------------------------------------------------------------
# Kernel: one batch tile per grid step, batch on the lane axis (W @ X layout).
# Weights/biases use constant index maps so they are DMA'd once and stay
# resident in VMEM.
# ---------------------------------------------------------------------------
def date2vec_kernel(x_ref, w1_ref, w2h_ref, w2x_ref, w3_ref, w4_ref, bias_ref,
                    o_ref):
    x = x_ref[...].astype(jnp.float32)                 # (Din, TB)
    din = x_ref.shape[0]
    dout = w1_ref.shape[0]
    inv_n = 1.0 / float(din + dout)

    (o1, o2, o3, o4), _ = _bias_offsets(din, dout)
    b1 = bias_ref[o1:o1 + dout, :]                     # (Dout, 1)
    b2 = bias_ref[o2:o2 + 2 * dout, :]                 # (2*Dout, 1), LN affine folded in
    b3 = bias_ref[o3:o3 + dout, :]                     # (Dout, 1)
    b4 = bias_ref[o4:o4 + din, :]                      # (Din, 1)

    # ---- encoder ----
    # linear1 -> cos -> (dropout = id)
    h1 = jnp.cos(jnp.dot(w1_ref[...], x,
                         preferred_element_type=jnp.float32) + b1)   # (Dout, TB)

    # LayerNorm over the virtual concat [h1; x] without materializing it.
    col_sum = (jnp.sum(h1, axis=0, keepdims=True)
               + jnp.sum(x, axis=0, keepdims=True))                  # (1, TB)
    mean = col_sum * inv_n
    c_h1 = h1 - mean
    c_x = x - mean
    var = (jnp.sum(c_h1 * c_h1, axis=0, keepdims=True)
           + jnp.sum(c_x * c_x, axis=0, keepdims=True)) * inv_n
    inv_std = lax.rsqrt(var + 1e-5)                    # PyTorch LayerNorm eps
    n_h1 = c_h1 * inv_std                              # (Dout, TB)
    n_x = c_x * inv_std                                # (Din, TB)

    # linear2 (LN gamma/beta pre-folded, split into h1-rows and x-rows)
    h2 = jnp.dot(w2h_ref[...], n_h1, preferred_element_type=jnp.float32)
    h2 = h2 + jnp.dot(w2x_ref[...], n_x, preferred_element_type=jnp.float32)
    h2 = _leaky_relu(h2 + b2)                          # (2*Dout, TB)

    # ---- decoder ----
    h3 = _leaky_relu(jnp.dot(w3_ref[...], h2,
                             preferred_element_type=jnp.float32) + b3)  # (Dout, TB)
    h4 = jnp.cos(jnp.dot(w4_ref[...], h3,
                         preferred_element_type=jnp.float32) + b4)      # (Din, TB)

    o_ref[...] = h4.astype(o_ref.dtype)                # (Din, TB): lane-dense store


# ---------------------------------------------------------------------------
# Wrapper: host-side algebra (LN fold, w2 split, weight transposes, bias pack),
# batch padding to a 128-multiple tile, batch-tiled pallas_call.
# ---------------------------------------------------------------------------
def date2vec_forward(x, params, *, tb=2048):
    """x: (B, input_dim) float32.  params: dict (weights stored as (in, out))."""
    B, Din = x.shape
    Dout = params["w1"].shape[1]
    N = Din + Dout

    # Fold LayerNorm affine into linear2, split its rows (h1-part / x-part) and
    # transpose every weight to (out, in) for the batch-on-lanes layout.
    g = params["ln_g"].reshape(N, 1).astype(jnp.float32)
    beta = params["ln_b"].reshape(1, N).astype(jnp.float32)
    w2p = g * params["w2"]                              # (N, 2*Dout)
    b2p = beta @ params["w2"] + params["b2"].reshape(1, -1)
    w1_t = params["w1"].T.astype(jnp.float32)           # (Dout, Din)
    w2h_t = w2p[:Dout].T.astype(jnp.float32)            # (2*Dout, Dout)
    w2x_t = w2p[Dout:].T.astype(jnp.float32)            # (2*Dout, Din)
    w3_t = params["w3"].T.astype(jnp.float32)           # (Dout, 2*Dout)
    w4_t = params["w4"].T.astype(jnp.float32)           # (Din, Dout)

    # Pack the four biases into one (rows, 1) column at 8-aligned sublane offsets.
    (o1, o2, o3, o4), total = _bias_offsets(Din, Dout)
    bias_col = jnp.zeros((total, 1), jnp.float32)
    for off, vec in ((o1, params["b1"]), (o2, b2p),
                     (o3, params["b3"]), (o4, params["b4"])):
        v = vec.reshape(-1).astype(jnp.float32)
        bias_col = bias_col.at[off:off + v.shape[0], 0].set(v)

    # Batch tiling on the lane axis: TB multiple of 128; pad B up to B_pad.
    b128 = _round_up(B, 128)
    tb_eff = _round_up(max(128, min(tb, b128)), 128)
    if b128 >= 2 * 128:
        # Keep >= 2 grid steps so the "parallel" batch axis can span both
        # TensorCores on v7x.
        tb_eff = min(tb_eff, _round_up(_cdiv(B, 2), 128))
    B_pad = _round_up(B, tb_eff)
    grid = (B_pad // tb_eff,)

    x_t = x.astype(jnp.float32).T                       # (Din, B)
    if B_pad != B:
        x_t = jnp.pad(x_t, ((0, 0), (0, B_pad - B)))

    def const_spec(a):
        # Constant index map -> same block every step, so Mosaic's pipeliner
        # skips the re-DMA and the operand stays resident in VMEM.
        return pl.BlockSpec(a.shape, lambda i: (0, 0))

    out_t = pl.pallas_call(
        date2vec_kernel,
        out_shape=jax.ShapeDtypeStruct((Din, B_pad), jnp.float32),
        grid=grid,
        in_specs=[
            pl.BlockSpec((Din, tb_eff), lambda i: (0, i)),   # x (pipelined)
            const_spec(w1_t),
            const_spec(w2h_t),
            const_spec(w2x_t),
            const_spec(w3_t),
            const_spec(w4_t),
            const_spec(bias_col),
        ],
        out_specs=pl.BlockSpec((Din, tb_eff), lambda i: (0, i)),
        compiler_params=pltpu.CompilerParams(
            dimension_semantics=("parallel",)),
    )(x_t, w1_t, w2h_t, w2x_t, w3_t, w4_t, bias_col)

    out = out_t.T                                       # (B_pad, Din)
    return out[:B] if B_pad != B else out


# ---------------------------------------------------------------------------
# Deterministic parameter init (mirrors the PyTorch __init__ shapes):
#   linear1: (Din -> Dout)      xavier_uniform weight, default-uniform bias
#   linear2: (Din+Dout -> 2*Dout)
#   linear3: (2*Dout -> Dout)
#   linear4: (Dout -> Din)
#   layernorm over (Dout + Din)
# ---------------------------------------------------------------------------
def _xavier_uniform(key, fan_in, fan_out):
    bound = math.sqrt(6.0 / (fan_in + fan_out))
    # stored as (in, out) so the reference computes x @ W
    return jax.random.uniform(key, (fan_in, fan_out), jnp.float32, -bound, bound)


def _linear_bias(key, fan_in, fan_out):
    bound = 1.0 / math.sqrt(fan_in)
    return jax.random.uniform(key, (1, fan_out), jnp.float32, -bound, bound)


def init_params(key, input_dim, output_dim):
    ks = jax.random.split(key, 8)
    Din, Dout = input_dim, output_dim
    return {
        "w1": _xavier_uniform(ks[0], Din, Dout),
        "b1": _linear_bias(ks[1], Din, Dout),
        "w2": _xavier_uniform(ks[2], Din + Dout, 2 * Dout),
        "b2": _linear_bias(ks[3], Din + Dout, 2 * Dout),
        "w3": _xavier_uniform(ks[4], 2 * Dout, Dout),
        "b3": _linear_bias(ks[5], 2 * Dout, Dout),
        "w4": _xavier_uniform(ks[6], Dout, Din),
        "b4": _linear_bias(ks[7], Dout, Din),
        "ln_g": jnp.ones((1, Din + Dout), jnp.float32),
        "ln_b": jnp.zeros((1, Din + Dout), jnp.float32),
    }


def _reference_forward(x, p):
    """Pure-JAX reference of the original forward (concat + explicit LayerNorm)."""
    h1 = jnp.cos(x @ p["w1"] + p["b1"])
    cat = jnp.concatenate([h1, x], axis=1)
    mean = jnp.mean(cat, axis=-1, keepdims=True)
    var = jnp.mean((cat - mean) ** 2, axis=-1, keepdims=True)
    normed = (cat - mean) / jnp.sqrt(var + 1e-5) * p["ln_g"] + p["ln_b"]
    h2 = _leaky_relu(normed @ p["w2"] + p["b2"])
    h3 = _leaky_relu(h2 @ p["w3"] + p["b3"])
    return jnp.cos(h3 @ p["w4"] + p["b4"])


if __name__ == "__main__":
    input_dim = 16
    output_dim = 32
    batch = 300          # not a multiple of 128 -> exercises padding + 2 grid steps

    key = jax.random.PRNGKey(0)
    k_x, k_p, k_g, k_b = jax.random.split(key, 4)

    x = jax.random.normal(k_x, (batch, input_dim), jnp.float32)
    params = init_params(k_p, input_dim, output_dim)
    # Perturb LayerNorm affine so the host-side fold is actually exercised.
    params["ln_g"] = params["ln_g"] + 0.1 * jax.random.normal(
        k_g, params["ln_g"].shape, jnp.float32)
    params["ln_b"] = params["ln_b"] + 0.1 * jax.random.normal(
        k_b, params["ln_b"].shape, jnp.float32)

    # Default tb=2048 is capped to 256 here -> B_pad=512, grid=(2,).
    out = date2vec_forward(x, params)
    out = jax.block_until_ready(out)

    ref = _reference_forward(x, params)
    assert out.shape == (batch, input_dim)
    assert jnp.allclose(out, ref, atol=1e-4, rtol=1e-4), float(
        jnp.max(jnp.abs(out - ref)))

    print("KERNEL_OK")
</pallas_src>

<mosaic_0001>
module attributes {stable_mosaic.version = 11 : i64} {
  func.func @date2vec_kernel(%arg0: i32, %arg1: memref<16x256xf32, #tpu.memory_space<vmem>>, %arg2: memref<32x16xf32, #tpu.memory_space<vmem>>, %arg3: memref<64x32xf32, #tpu.memory_space<vmem>>, %arg4: memref<64x16xf32, #tpu.memory_space<vmem>>, %arg5: memref<32x64xf32, #tpu.memory_space<vmem>>, %arg6: memref<16x32xf32, #tpu.memory_space<vmem>>, %arg7: memref<144x1xf32, #tpu.memory_space<vmem>>, %arg8: memref<16x256xf32, #tpu.memory_space<vmem>>) attributes {dimension_semantics = [#tpu.dimension_semantics<parallel>], iteration_bounds = array<i64: 2>, scalar_prefetch = 0 : i64, scratch_operands = 0 : i64, tpu.core_type = #tpu.core_type<tc>, window_params = [{transform_indices = @transform_0, window_bounds = array<i64: 16, 256>}, {pipeline_mode = #tpu.pipeline_mode<synchronous>, transform_indices = @transform_1, window_bounds = array<i64: 32, 16>}, {pipeline_mode = #tpu.pipeline_mode<synchronous>, transform_indices = @transform_2, window_bounds = array<i64: 64, 32>}, {pipeline_mode = #tpu.pipeline_mode<synchronous>, transform_indices = @transform_3, window_bounds = array<i64: 64, 16>}, {pipeline_mode = #tpu.pipeline_mode<synchronous>, transform_indices = @transform_4, window_bounds = array<i64: 32, 64>}, {pipeline_mode = #tpu.pipeline_mode<synchronous>, transform_indices = @transform_5, window_bounds = array<i64: 16, 32>}, {pipeline_mode = #tpu.pipeline_mode<synchronous>, transform_indices = @transform_6, window_bounds = array<i64: 144, 1>}, {transform_indices = @transform_7, window_bounds = array<i64: 16, 256>}]} {
    %c0 = arith.constant 0 : index
    %c0_0 = arith.constant 0 : index
    %0 = vector.load %arg1[%c0, %c0_0] : memref<16x256xf32, #tpu.memory_space<vmem>>, vector<16x256xf32>
    %c0_1 = arith.constant 0 : index
    %c0_2 = arith.constant 0 : index
    %1 = vector.load %arg7[%c0_1, %c0_2] : memref<144x1xf32, #tpu.memory_space<vmem>>, vector<32x1xf32>
    %c32 = arith.constant 32 : index
    %c0_3 = arith.constant 0 : index
    %2 = vector.load %arg7[%c32, %c0_3] : memref<144x1xf32, #tpu.memory_space<vmem>>, vector<64x1xf32>
    %c96 = arith.constant 96 : index
    %c0_4 = arith.constant 0 : index
    %3 = vector.load %arg7[%c96, %c0_4] : memref<144x1xf32, #tpu.memory_space<vmem>>, vector<32x1xf32>
    %c128 = arith.constant 128 : index
    %c0_5 = arith.constant 0 : index
    %4 = vector.load %arg7[%c128, %c0_5] : memref<144x1xf32, #tpu.memory_space<vmem>>, vector<16x1xf32>
    %c0_6 = arith.constant 0 : index
    %c0_7 = arith.constant 0 : index
    %5 = vector.load %arg2[%c0_6, %c0_7] : memref<32x16xf32, #tpu.memory_space<vmem>>, vector<32x16xf32>
    %cst = arith.constant dense<0.000000e+00> : vector<32x256xf32>
    %6 = tpu.matmul %5, %0, %cst {dimension_numbers = #tpu.dot_dimension_numbers<[1], [0], [0], [1], [0, 0, 1, 1], [], []>} : vector<32x16xf32>, vector<16x256xf32>, vector<32x256xf32> -> vector<32x256xf32>
    %7 = vector.broadcast %1 : vector<32x1xf32> to vector<32x256xf32>
    %8 = arith.addf %6, %7 : vector<32x256xf32>
    %9 = math.cos %8 : vector<32x256xf32>
    %cst_8 = arith.constant dense<0.000000e+00> : vector<256xf32>
    %10 = vector.multi_reduction <add>, %9, %cst_8 [0] : vector<32x256xf32> to vector<256xf32>
    %11 = vector.shape_cast %10 : vector<256xf32> to vector<1x256xf32>
    %cst_9 = arith.constant dense<0.000000e+00> : vector<256xf32>
    %12 = vector.multi_reduction <add>, %0, %cst_9 [0] : vector<16x256xf32> to vector<256xf32>
    %13 = vector.shape_cast %12 : vector<256xf32> to vector<1x256xf32>
    %14 = arith.addf %11, %13 : vector<1x256xf32>
    %cst_10 = arith.constant 0.020833334 : f32
    %15 = vector.broadcast %cst_10 : f32 to vector<1x256xf32>
    %16 = arith.mulf %14, %15 : vector<1x256xf32>
    %17 = vector.broadcast %16 : vector<1x256xf32> to vector<32x256xf32>
    %18 = arith.subf %9, %17 : vector<32x256xf32>
    %19 = vector.broadcast %16 : vector<1x256xf32> to vector<16x256xf32>
    %20 = arith.subf %0, %19 : vector<16x256xf32>
    %21 = arith.mulf %18, %18 : vector<32x256xf32>
    %cst_11 = arith.constant dense<0.000000e+00> : vector<256xf32>
    %22 = vector.multi_reduction <add>, %21, %cst_11 [0] : vector<32x256xf32> to vector<256xf32>
    %23 = vector.shape_cast %22 : vector<256xf32> to vector<1x256xf32>
    %24 = arith.mulf %20, %20 : vector<16x256xf32>
    %cst_12 = arith.constant dense<0.000000e+00> : vector<256xf32>
    %25 = vector.multi_reduction <add>, %24, %cst_12 [0] : vector<16x256xf32> to vector<256xf32>
    %26 = vector.shape_cast %25 : vector<256xf32> to vector<1x256xf32>
    %27 = arith.addf %23, %26 : vector<1x256xf32>
    %cst_13 = arith.constant 0.020833334 : f32
    %28 = vector.broadcast %cst_13 : f32 to vector<1x256xf32>
    %29 = arith.mulf %27, %28 : vector<1x256xf32>
    %cst_14 = arith.constant 9.99999974E-6 : f32
    %30 = vector.broadcast %cst_14 : f32 to vector<1x256xf32>
    %31 = arith.addf %29, %30 : vector<1x256xf32>
    %32 = math.rsqrt %31 : vector<1x256xf32>
    %33 = vector.broadcast %32 : vector<1x256xf32> to vector<32x256xf32>
    %34 = arith.mulf %18, %33 : vector<32x256xf32>
    %35 = vector.broadcast %32 : vector<1x256xf32> to vector<16x256xf32>
    %36 = arith.mulf %20, %35 : vector<16x256xf32>
    %c0_15 = arith.constant 0 : index
    %c0_16 = arith.constant 0 : index
    %37 = vector.load %arg3[%c0_15, %c0_16] : memref<64x32xf32, #tpu.memory_space<vmem>>, vector<64x32xf32>
    %cst_17 = arith.constant dense<0.000000e+00> : vector<64x256xf32>
    %38 = tpu.matmul %37, %34, %cst_17 {dimension_numbers = #tpu.dot_dimension_numbers<[1], [0], [0], [1], [0, 0, 1, 1], [], []>} : vector<64x32xf32>, vector<32x256xf32>, vector<64x256xf32> -> vector<64x256xf32>
    %c0_18 = arith.constant 0 : index
    %c0_19 = arith.constant 0 : index
    %39 = vector.load %arg4[%c0_18, %c0_19] : memref<64x16xf32, #tpu.memory_space<vmem>>, vector<64x16xf32>
    %cst_20 = arith.constant dense<0.000000e+00> : vector<64x256xf32>
    %40 = tpu.matmul %39, %36, %cst_20 {dimension_numbers = #tpu.dot_dimension_numbers<[1], [0], [0], [1], [0, 0, 1, 1], [], []>} : vector<64x16xf32>, vector<16x256xf32>, vector<64x256xf32> -> vector<64x256xf32>
    %41 = arith.addf %38, %40 : vector<64x256xf32>
    %42 = vector.broadcast %2 : vector<64x1xf32> to vector<64x256xf32>
    %43 = arith.addf %41, %42 : vector<64x256xf32>
    %cst_21 = arith.constant 0.000000e+00 : f32
    %44 = vector.broadcast %cst_21 : f32 to vector<64x256xf32>
    %45 = arith.cmpf ogt, %43, %44 : vector<64x256xf32>
    %cst_22 = arith.constant 2.000000e-01 : f32
    %46 = vector.broadcast %cst_22 : f32 to vector<64x256xf32>
    %47 = arith.mulf %46, %43 : vector<64x256xf32>
    %48 = arith.select %45, %43, %47 : vector<64x256xi1>, vector<64x256xf32>
    %c0_23 = arith.constant 0 : index
    %c0_24 = arith.constant 0 : index
    %49 = vector.load %arg5[%c0_23, %c0_24] : memref<32x64xf32, #tpu.memory_space<vmem>>, vector<32x64xf32>
    %cst_25 = arith.constant dense<0.000000e+00> : vector<32x256xf32>
    %50 = tpu.matmul %49, %48, %cst_25 {dimension_numbers = #tpu.dot_dimension_numbers<[1], [0], [0], [1], [0, 0, 1, 1], [], []>} : vector<32x64xf32>, vector<64x256xf32>, vector<32x256xf32> -> vector<32x256xf32>
    %51 = vector.broadcast %3 : vector<32x1xf32> to vector<32x256xf32>
    %52 = arith.addf %50, %51 : vector<32x256xf32>
    %cst_26 = arith.constant 0.000000e+00 : f32
    %53 = vector.broadcast %cst_26 : f32 to vector<32x256xf32>
    %54 = arith.cmpf ogt, %52, %53 : vector<32x256xf32>
    %cst_27 = arith.constant 2.000000e-01 : f32
    %55 = vector.broadcast %cst_27 : f32 to vector<32x256xf32>
    %56 = arith.mulf %55, %52 : vector<32x256xf32>
    %57 = arith.select %54, %52, %56 : vector<32x256xi1>, vector<32x256xf32>
    %c0_28 = arith.constant 0 : index
    %c0_29 = arith.constant 0 : index
    %58 = vector.load %arg6[%c0_28, %c0_29] : memref<16x32xf32, #tpu.memory_space<vmem>>, vector<16x32xf32>
    %cst_30 = arith.constant dense<0.000000e+00> : vector<16x256xf32>
    %59 = tpu.matmul %58, %57, %cst_30 {dimension_numbers = #tpu.dot_dimension_numbers<[1], [0], [0], [1], [0, 0, 1, 1], [], []>} : vector<16x32xf32>, vector<32x256xf32>, vector<16x256xf32> -> vector<16x256xf32>
    %60 = vector.broadcast %4 : vector<16x1xf32> to vector<16x256xf32>
    %61 = arith.addf %59, %60 : vector<16x256xf32>
    %62 = math.cos %61 : vector<16x256xf32>
    %c0_31 = arith.constant 0 : index
    %c0_32 = arith.constant 0 : index
    %63 = vector.load %arg8[%c0_31, %c0_32] : memref<16x256xf32, #tpu.memory_space<vmem>>, vector<16x256xf32>
    tpu.vector_store %arg8[%c0_31, %c0_32], %62 {strides = array<i32>} : memref<16x256xf32, #tpu.memory_space<vmem>>, vector<16x256xf32>,
    return
  }
  func.func @transform_0(%arg0: i32) -> (i32, i32) {
    %c0_i32 = arith.constant 0 : i32
    %c0_i32_0 = arith.constant 0 : i32
    return %c0_i32, %arg0 : i32, i32
  }
  func.func @transform_1(%arg0: i32) -> (i32, i32) {
    %c0_i32 = arith.constant 0 : i32
    %c0_i32_0 = arith.constant 0 : i32
    %c0_i32_1 = arith.constant 0 : i32
    return %c0_i32, %c0_i32_0 : i32, i32
  }
  func.func @transform_2(%arg0: i32) -> (i32, i32) {
    %c0_i32 = arith.constant 0 : i32
    %c0_i32_0 = arith.constant 0 : i32
    %c0_i32_1 = arith.constant 0 : i32
    return %c0_i32, %c0_i32_0 : i32, i32
  }
  func.func @transform_3(%arg0: i32) -> (i32, i32) {
    %c0_i32 = arith.constant 0 : i32
    %c0_i32_0 = arith.constant 0 : i32
    %c0_i32_1 = arith.constant 0 : i32
    return %c0_i32, %c0_i32_0 : i32, i32
  }
  func.func @transform_4(%arg0: i32) -> (i32, i32) {
    %c0_i32 = arith.constant 0 : i32
    %c0_i32_0 = arith.constant 0 : i32
    %c0_i32_1 = arith.constant 0 : i32
    return %c0_i32, %c0_i32_0 : i32, i32
  }
  func.func @transform_5(%arg0: i32) -> (i32, i32) {
    %c0_i32 = arith.constant 0 : i32
    %c0_i32_0 = arith.constant 0 : i32
    %c0_i32_1 = arith.constant 0 : i32
    return %c0_i32, %c0_i32_0 : i32, i32
  }
  func.func @transform_6(%arg0: i32) -> (i32, i32) {
    %c0_i32 = arith.constant 0 : i32
    %c0_i32_0 = arith.constant 0 : i32
    %c0_i32_1 = arith.constant 0 : i32
    return %c0_i32, %c0_i32_0 : i32, i32
  }
  func.func @transform_7(%arg0: i32) -> (i32, i32) {
    %c0_i32 = arith.constant 0 : i32
    %c0_i32_0 = arith.constant 0 : i32
    return %c0_i32, %arg0 : i32, i32
  }
}

</mosaic_0001>

<llo_original>
// kernel: tpu_custom_call.1
$region0: #{tpu_custom_call.1}
  #allocation0 [shape = 'u32[]', space=smem, size = 0x4, offset = 0x4, fixed_abs, tag = 'smem constant byte address 0x4 - core index']
  #allocation1 [shape = 'u32[72,128]{1,0:T(1,128)}', space=vmem, size = 0x9000, scoped, tag = 'internal scratch']
  %s0 = inlined_call_operand.vmem [shape: f32[16,512], index: 0, kind: input, shape index: {}]
  %s1 = inlined_call_operand.vmem [shape: f32[32,16], index: 1, kind: input, shape index: {}]
  %s2 = inlined_call_operand.vmem [shape: f32[64,32], index: 2, kind: input, shape index: {}]
  %s3 = inlined_call_operand.vmem [shape: f32[64,16], index: 3, kind: input, shape index: {}]
  %s4 = inlined_call_operand.vmem [shape: f32[32,64], index: 4, kind: input, shape index: {}]
  %s5 = inlined_call_operand.vmem [shape: f32[16,32], index: 5, kind: input, shape index: {}]
  %s6 = inlined_call_operand.vmem [shape: f32[144,1], index: 6, kind: input, shape index: {}]
  %s7 = inlined_call_operand.hbm [shape: f32[16,512], index: 7, kind: output, shape index: {}]
  %s8 = sld [smem:[#allocation0]]
  $region84: #{tpu_custom_call.1} parent=0
    _
  %s10 = ssub.s32 1, %s8
  %s11 = scalar_select 0, %s10, %s8
  $region1: #{tpu_custom_call.1} parent=0
    #allocation2 [shape = 'u8[32768]{0}', space=vmem, size = 0x8000, scoped, tag = 'input window, operand 0']
    #allocation3 [shape = 'u8[32768]{0}', space=vmem, size = 0x8000, scoped, tag = 'output window, operand 0']
    #allocation4 [shape = 's32[2]{0}', space=sflag, size = 0x8, scoped, tag = 'scoped memory for tpu_custom_call.1']
    %12 = vsyncpa [#allocation4], 0
    %s13 = scalar_lea.sflag [#allocation4], 1
    %14 = vsyncpa %s13, 0
    loop: start=0, step=1, limit=4
    $region2: #{tpu_custom_call.1} parent=1 // loop_pre_header
      _
    $region3: #{tpu_custom_call.1} parent=1 // loop_header
      %s16 = sphi 0, %s20
      %p17 = scmp.ge.s32.totalorder %s16, 4
      %s26 = sphi 0, %s28
      %s29 = sphi 0, %s26
      %s30 = sphi 0, %s29
      %s46 = sphi 0, %s30
      %s50 = sphi 0, %s50
      %s52 = sphi 0, %s50
      %s53 = sphi 0, %s52
      %s67 = sphi 0, %s53
      %s71 = sphi 0, %s71
      %s73 = sphi 0, %s71
      %s74 = sphi 0, %s73
      %s88 = sphi 0, %s74
      %s92 = sphi 0, %s92
      %s94 = sphi 0, %s92
      %s95 = sphi 0, %s94
      %s109 = sphi 0, %s95
      %s113 = sphi 0, %s113
      %s115 = sphi 0, %s113
      %s116 = sphi 0, %s115
      %s130 = sphi 0, %s116
      %s134 = sphi 0, %s134
      %s136 = sphi 0, %s134
      %s137 = sphi 0, %s136
      %s151 = sphi 0, %s137
      %s155 = sphi 0, %s155
      %s157 = sphi 0, %s155
      %s158 = sphi 0, %s157
      %s172 = sphi 0, %s158
      %s178 = sphi 0, %s180
      %s181 = sphi 0, %s178
      %s182 = sphi 0, %s181
      %s198 = sphi 0, %s182
    $region4: #{tpu_custom_call.1} parent=1 // loop_header_branch
      %19 = sbr.rel (%p17) target = $region8
    $region5: #{tpu_custom_call.1} parent=1 // loop_body
      %s21 = ssub.s32 %s16, 1
      %s22 = ssub.s32 %s16, 2
      %s23 = sadd.s32 %s16, 1
      %s24 = ssub.s32 %s16, %s23
      %p25 = scmp.eq.s32.totalorder %s24, 0
      %s27 = sadd.s32 %s26, 1
      %s28 = scalar_select %p25, %s26, %s27
      %p31 = pneg %p25
      %p32 = scmp.eq.s32.totalorder %s16, 1
      %p33 = por %p31, %p32
      %p34 = scmp.ne.s32.totalorder %s26, %s29
      %p35 = scmp.eq.s32.totalorder %s16, 0
      %p36 = por %p34, %p35
      %p37 = scmp.ne.s32.totalorder %s26, %s29
      %p38 = scmp.eq.s32.totalorder %s21, 1
      %p39 = por %p37, %p38
      %p40 = scmp.ne.s32.totalorder %s29, %s30
      %p41 = scmp.eq.s32.totalorder %s21, 0
      %p42 = por %p40, %p41
      %p43 = scmp.ne.s32.totalorder %s29, %s30
      %p44 = scmp.eq.s32.totalorder %s22, 1
      %p45 = por %p43, %p44
      %p47 = scmp.ne.s32.totalorder %s30, %s46
      %p48 = scmp.eq.s32.totalorder %s22, 0
      %p49 = por %p47, %p48
      %s51 = sadd.s32 %s50, 1
      %p54 = scmp.eq.s32.totalorder %s16, 1
      %p55 = scmp.ne.s32.totalorder %s50, %s52
      %p56 = scmp.eq.s32.totalorder %s16, 0
      %p57 = por %p55, %p56
      %p58 = scmp.ne.s32.totalorder %s50, %s52
      %p59 = scmp.eq.s32.totalorder %s21, 1
      %p60 = por %p58, %p59
      %p61 = scmp.ne.s32.totalorder %s52, %s53
      %p62 = scmp.eq.s32.totalorder %s21, 0
      %p63 = por %p61, %p62
      %p64 = scmp.ne.s32.totalorder %s52, %s53
      %p65 = scmp.eq.s32.totalorder %s22, 1
      %p66 = por %p64, %p65
      %p68 = scmp.ne.s32.totalorder %s53, %s67
      %p69 = scmp.eq.s32.totalorder %s22, 0
      %p70 = por %p68, %p69
      %s72 = sadd.s32 %s71, 1
      %p75 = scmp.eq.s32.totalorder %s16, 1
      %p76 = scmp.ne.s32.totalorder %s71, %s73
      %p77 = scmp.eq.s32.totalorder %s16, 0
      %p78 = por %p76, %p77
      %p79 = scmp.ne.s32.totalorder %s71, %s73
      %p80 = scmp.eq.s32.totalorder %s21, 1
      %p81 = por %p79, %p80
      %p82 = scmp.ne.s32.totalorder %s73, %s74
      %p83 = scmp.eq.s32.totalorder %s21, 0
      %p84 = por %p82, %p83
      %p85 = scmp.ne.s32.totalorder %s73, %s74
      %p86 = scmp.eq.s32.totalorder %s22, 1
      %p87 = por %p85, %p86
      %p89 = scmp.ne.s32.totalorder %s74, %s88
      %p90 = scmp.eq.s32.totalorder %s22, 0
      %p91 = por %p89, %p90
      %s93 = sadd.s32 %s92, 1
      %p96 = scmp.eq.s32.totalorder %s16, 1
      %p97 = scmp.ne.s32.totalorder %s92, %s94
      %p98 = scmp.eq.s32.totalorder %s16, 0
      %p99 = por %p97, %p98
      %p100 = scmp.ne.s32.totalorder %s92, %s94
      %p101 = scmp.eq.s32.totalorder %s21, 1
      %p102 = por %p100, %p101
      %p103 = scmp.ne.s32.totalorder %s94, %s95
      %p104 = scmp.eq.s32.totalorder %s21, 0
      %p105 = por %p103, %p104
      %p106 = scmp.ne.s32.totalorder %s94, %s95
      %p107 = scmp.eq.s32.totalorder %s22, 1
      %p108 = por %p106, %p107
      %p110 = scmp.ne.s32.totalorder %s95, %s109
      %p111 = scmp.eq.s32.totalorder %s22, 0
      %p112 = por %p110, %p111
      %s114 = sadd.s32 %s113, 1
      %p117 = scmp.eq.s32.totalorder %s16, 1
      %p118 = scmp.ne.s32.totalorder %s113, %s115
      %p119 = scmp.eq.s32.totalorder %s16, 0
      %p120 = por %p118, %p119
      %p121 = scmp.ne.s32.totalorder %s113, %s115
      %p122 = scmp.eq.s32.totalorder %s21, 1
      %p123 = por %p121, %p122
      %p124 = scmp.ne.s32.totalorder %s115, %s116
      %p125 = scmp.eq.s32.totalorder %s21, 0
      %p126 = por %p124, %p125
      %p127 = scmp.ne.s32.totalorder %s115, %s116
      %p128 = scmp.eq.s32.totalorder %s22, 1
      %p129 = por %p127, %p128
      %p131 = scmp.ne.s32.totalorder %s116, %s130
      %p132 = scmp.eq.s32.totalorder %s22, 0
      %p133 = por %p131, %p132
      %s135 = sadd.s32 %s134, 1
      %p138 = scmp.eq.s32.totalorder %s16, 1
      %p139 = scmp.ne.s32.totalorder %s134, %s136
      %p140 = scmp.eq.s32.totalorder %s16, 0
      %p141 = por %p139, %p140
      %p142 = scmp.ne.s32.totalorder %s134, %s136
      %p143 = scmp.eq.s32.totalorder %s21, 1
      %p144 = por %p142, %p143
      %p145 = scmp.ne.s32.totalorder %s136, %s137
      %p146 = scmp.eq.s32.totalorder %s21, 0
      %p147 = por %p145, %p146
      %p148 = scmp.ne.s32.totalorder %s136, %s137
      %p149 = scmp.eq.s32.totalorder %s22, 1
      %p150 = por %p148, %p149
      %p152 = scmp.ne.s32.totalorder %s137, %s151
      %p153 = scmp.eq.s32.totalorder %s22, 0
      %p154 = por %p152, %p153
      %s156 = sadd.s32 %s155, 1
      %p159 = scmp.eq.s32.totalorder %s16, 1
      %p160 = scmp.ne.s32.totalorder %s155, %s157
      %p161 = scmp.eq.s32.totalorder %s16, 0
      %p162 = por %p160, %p161
      %p163 = scmp.ne.s32.totalorder %s155, %s157
      %p164 = scmp.eq.s32.totalorder %s21, 1
      %p165 = por %p163, %p164
      %p166 = scmp.ne.s32.totalorder %s157, %s158
      %p167 = scmp.eq.s32.totalorder %s21, 0
      %p168 = por %p166, %p167
      %p169 = scmp.ne.s32.totalorder %s157, %s158
      %p170 = scmp.eq.s32.totalorder %s22, 1
      %p171 = por %p169, %p170
      %p173 = scmp.ne.s32.totalorder %s158, %s172
      %p174 = scmp.eq.s32.totalorder %s22, 0
      %p175 = por %p173, %p174
      %s176 = ssub.s32 %s16, %s23
      %p177 = scmp.eq.s32.totalorder %s176, 0
      %s179 = sadd.s32 %s178, 1
      %s180 = scalar_select %p177, %s178, %s179
      %p183 = pneg %p177
      %p184 = scmp.eq.s32.totalorder %s16, 1
      %p185 = por %p183, %p184
      %p186 = scmp.ne.s32.totalorder %s178, %s181
      %p187 = scmp.eq.s32.totalorder %s16, 0
      %p188 = por %p186, %p187
      %p189 = scmp.ne.s32.totalorder %s178, %s181
      %p190 = scmp.eq.s32.totalorder %s21, 1
      %p191 = por %p189, %p190
      %p192 = scmp.ne.s32.totalorder %s181, %s182
      %p193 = scmp.eq.s32.totalorder %s21, 0
      %p194 = por %p192, %p193
      %p195 = scmp.ne.s32.totalorder %s181, %s182
      %p196 = scmp.eq.s32.totalorder %s22, 1
      %p197 = por %p195, %p196
      %p199 = scmp.ne.s32.totalorder %s182, %s198
      %p200 = scmp.eq.s32.totalorder %s22, 0
      %p201 = por %p199, %p200
      %p202 = scmp.le.s32.totalorder 1, %s16
      %p203 = scmp.lt.s32.totalorder %s16, 3
      %p204 = pnand %p202, %p203
      %p205 = pneg %p204
      // Predicated region
      $region9: #{tpu_custom_call.1} parent=5 // pred_check
        _
      $region10: #{tpu_custom_call.1} parent=5 // pred_check_branch
        %207 = sbr.rel (%p204) target = $region12
      $region11: #{tpu_custom_call.1} parent=5 // pred_region
        %s208 = ssub.s32 %s16, 1
        // Predicated region
        $region13: #{tpu_custom_call.1} parent=11 // pred_check
          %p209 = pneg %p63
        $region14: #{tpu_custom_call.1} parent=11 // pred_check_branch
          %211 = sbr.rel (%p209) target = $region16
        $region15: #{tpu_custom_call.1} parent=11 // pred_region
          _
        $region16: #{tpu_custom_call.1} parent=11 // pred_fallthru
          _
        // Predicated region
        $region17: #{tpu_custom_call.1} parent=11 // pred_check
          %p212 = pneg %p84
        $region18: #{tpu_custom_call.1} parent=11 // pred_check_branch
          %214 = sbr.rel (%p212) target = $region20
        $region19: #{tpu_custom_call.1} parent=11 // pred_region
          _
        $region20: #{tpu_custom_call.1} parent=11 // pred_fallthru
          _
        // Predicated region
        $region21: #{tpu_custom_call.1} parent=11 // pred_check
          %p215 = pneg %p105
        $region22: #{tpu_custom_call.1} parent=11 // pred_check_branch
          %217 = sbr.rel (%p215) target = $region24
        $region23: #{tpu_custom_call.1} parent=11 // pred_region
          _
        $region24: #{tpu_custom_call.1} parent=11 // pred_fallthru
          _
        // Predicated region
        $region25: #{tpu_custom_call.1} parent=11 // pred_check
          %p218 = pneg %p126
        $region26: #{tpu_custom_call.1} parent=11 // pred_check_branch
          %220 = sbr.rel (%p218) target = $region28
        $region27: #{tpu_custom_call.1} parent=11 // pred_region
          _
        $region28: #{tpu_custom_call.1} parent=11 // pred_fallthru
          _
        // Predicated region
        $region29: #{tpu_custom_call.1} parent=11 // pred_check
          %p221 = pneg %p147
        $region30: #{tpu_custom_call.1} parent=11 // pred_check_branch
          %223 = sbr.rel (%p221) target = $region32
        $region31: #{tpu_custom_call.1} parent=11 // pred_region
          _
        $region32: #{tpu_custom_call.1} parent=11 // pred_fallthru
          _
        // Predicated region
        $region33: #{tpu_custom_call.1} parent=11 // pred_check
          %p224 = pneg %p168
        $region34: #{tpu_custom_call.1} parent=11 // pred_check_branch
          %226 = sbr.rel (%p224) target = $region36
        $region35: #{tpu_custom_call.1} parent=11 // pred_region
          _
        $region36: #{tpu_custom_call.1} parent=11 // pred_fallthru
          _
      $region12: #{tpu_custom_call.1} parent=5 // pred_fallthru
        _
      %p227 = scmp.lt.s32.totalorder %s16, 2
      // Predicated region
      $region37: #{tpu_custom_call.1} parent=5 // pred_check
        %p228 = pneg %p227
      $region38: #{tpu_custom_call.1} parent=5 // pred_check_branch
        %230 = sbr.rel (%p228) target = $region40
      $region39: #{tpu_custom_call.1} parent=5 // pred_region
        // Predicated region
        $region41: #{tpu_custom_call.1} parent=39 // pred_check
          %p231 = pneg %p36
        $region42: #{tpu_custom_call.1} parent=39 // pred_check_branch
          %233 = sbr.rel (%p231) target = $region44
        $region43: #{tpu_custom_call.1} parent=39 // pred_region
          %s234 = sand.u32 %s26, 1
          %s235 = sand.u32 %s26, 1
          %s236 = smul.addr %s235, 32
          %s237 = scalar_lea.vmem [#allocation2], %s236
          %s238 = smul.u32 2, %s16
          %s239 = smul.addr %s238, 8
          %s240 = scalar_lea.vmem %s0, %s239
          // Predicated region
          $region45: #{tpu_custom_call.1} parent=43 // pred_check
            _
          $region46: #{tpu_custom_call.1} parent=43 // pred_check_branch
            %242 = sbr.rel (0) target = $region48
          $region47: #{tpu_custom_call.1} parent=43 // pred_region
            // Predicated region
            $region49: #{tpu_custom_call.1} parent=47 // pred_check
              _
            $region50: #{tpu_custom_call.1} parent=47 // pred_check_branch
              %244 = sbr.rel (0) target = $region52
            $region51: #{tpu_custom_call.1} parent=47 // pred_region
              loop: start=0, step=1, limit=1
              $region53: #{tpu_custom_call.1} parent=51 // loop_pre_header
                _
              $region54: #{tpu_custom_call.1} parent=51 // loop_header
                %s246 = sphi 0, %s250
                %p247 = scmp.ge.s32.totalorder %s246, 1
                %s251 = sphi %s240, %s240
                %s252 = sphi %s237, %s237
              $region55: #{tpu_custom_call.1} parent=51 // loop_header_branch
                %249 = sbr.rel (%p247) target = $region59
              $region56: #{tpu_custom_call.1} parent=51 // loop_body
                %v253 = vld [vmem:[%s251] sm:$0xff]
                %254 = vst [vmem:[%s252] sm:$0xff] %v253
                %v255 = vld [vmem:[%s251 + $0x8] sm:$0xff]
                %256 = vst [vmem:[%s252 + $0x8] sm:$0xff] %v255
                %v257 = vld [vmem:[%s251 + $0x20] sm:$0xff]
                %258 = vst [vmem:[%s252 + $0x10] sm:$0xff] %v257
                %v259 = vld [vmem:[%s251 + $0x28] sm:$0xff]
                %260 = vst [vmem:[%s252 + $0x18] sm:$0xff] %v259
              $region57: #{tpu_custom_call.1} parent=51 // loop_footer
                %s250 = sadd.s32 1, %s246
              $region58: #{tpu_custom_call.1} parent=51 // loop_footer_branch
                %245 = sbr.rel target = $region54
              $region59: #{tpu_custom_call.1} parent=51 // loop_exit
                _
            $region52: #{tpu_custom_call.1} parent=47 // pred_fallthru
              _
            // Predicated region
            $region60: #{tpu_custom_call.1} parent=47 // pred_check
              _
            $region61: #{tpu_custom_call.1} parent=47 // pred_check_branch
              %262 = sbr.rel target = $region63
            $region62: #{tpu_custom_call.1} parent=47 // pred_region
              _
            $region63: #{tpu_custom_call.1} parent=47 // pred_fallthru
              _
          $region48: #{tpu_custom_call.1} parent=43 // pred_fallthru
            _
          %263 = vnop
        $region44: #{tpu_custom_call.1} parent=39 // pred_fallthru
          _
      $region40: #{tpu_custom_call.1} parent=5 // pred_fallthru
        _
      %p264 = scmp.le.s32.totalorder 1, %s16
      %p265 = scmp.lt.s32.totalorder %s16, 3
      %p266 = pnand %p264, %p265
      %p267 = pneg %p266
      // Predicated region
      $region64: #{tpu_custom_call.1} parent=5 // pred_check
        _
      $region65: #{tpu_custom_call.1} parent=5 // pred_check_branch
        %269 = sbr.rel (%p266) target = $region67
      $region66: #{tpu_custom_call.1} parent=5 // pred_region
        %s270 = ssub.s32 %s16, 1
        %s271 = sand.u32 %s29, 1
        %s272 = sand.u32 %s29, 1
        %s273 = smul.addr %s272, 32
        %s274 = scalar_lea.vmem [#allocation2], %s273
        // Predicated region
        $region68: #{tpu_custom_call.1} parent=66 // pred_check
          %p275 = pneg %p42
        $region69: #{tpu_custom_call.1} parent=66 // pred_check_branch
          %277 = sbr.rel (%p275) target = $region71
        $region70: #{tpu_custom_call.1} parent=66 // pred_region
          _
        $region71: #{tpu_custom_call.1} parent=66 // pred_fallthru
          _
        %s278 = sand.u32 %s29, 1
        %s279 = sand.u32 %s29, 1
        %s280 = smul.addr %s279, 32
        %s281 = scalar_lea.vmem [#allocation2], %s280
        %p282 = pneg %p42
        %p283 = pneg %p39
        %p284 = pneg %p63
        %p285 = pneg %p60
        %p286 = pneg %p84
        %p287 = pneg %p81
        %p288 = pneg %p105
        %p289 = pneg %p102
        %p290 = pneg %p126
        %p291 = pneg %p123
        %p292 = pneg %p147
        %p293 = pneg %p144
        %p294 = pneg %p168
        %p295 = pneg %p165
        %p296 = pneg %p194
        %p297 = pneg %p191
        %s298 = sand.u32 %s181, 1
        %s299 = scalar_lea.sflag [#allocation4], %s298
        %s300 = sand.u32 %s181, 1
        %s301 = smul.addr %s300, 32
        %s302 = scalar_lea.vmem [#allocation3], %s301
        %s303 = smul.u32 2, %s21
        %s304 = smul.u32 2, %s21
        %v305 = vld [vmem:[%s274] sm:$0xff]
        %v306 = vld [vmem:[%s274 + $0x8] sm:$0xff]
        %v307 = vld [vmem:[%s274 + $0x10] sm:$0xff]
        %v308 = vld [vmem:[%s274 + $0x18] sm:$0xff]
        %v309 = vld [vmem:[%s6] sm:$0xff]
        %v310 = vld [vmem:[%s6 + $0x8] sm:$0xff]
        %v311 = vld [vmem:[%s6 + $0x10] sm:$0xff]
        %v312 = vld [vmem:[%s6 + $0x18] sm:$0xff]
        %v313 = vld [vmem:[%s6 + $0x20] sm:$0xff]
        %v314 = vld [vmem:[%s6 + $0x28] sm:$0xff]
        %v315 = vld [vmem:[%s6 + $0x30] sm:$0xff]
        %v316 = vld [vmem:[%s6 + $0x38] sm:$0xff]
        %v317 = vld [vmem:[%s6 + $0x40] sm:$0xff]
        %v318 = vld [vmem:[%s6 + $0x48] sm:$0xff]
        %v319 = vld [vmem:[%s6 + $0x50] sm:$0xff]
        %v320 = vld [vmem:[%s6 + $0x58] sm:$0xff]
        %v321 = vld [vmem:[%s6 + $0x60] sm:$0xff]
        %v322 = vld [vmem:[%s6 + $0x68] sm:$0xff]
        %v323 = vld [vmem:[%s6 + $0x70] sm:$0xff]
        %v324 = vld [vmem:[%s6 + $0x78] sm:$0xff]
        %v325 = vld [vmem:[%s6 + $0x80] sm:$0xff]
        %v326 = vld [vmem:[%s6 + $0x88] sm:$0xff]
        %v327 = vld [vmem:[%s1] sm:$0xff]
        %v328 = vld [vmem:[%s1 + $0x8] sm:$0xff]
        %v329 = vld [vmem:[%s1 + $0x10] sm:$0xff]
        %v330 = vld [vmem:[%s1 + $0x18] sm:$0xff]
        %332 = vset.pattern.permute.xlu0 0
        %333 = vperm.xlu0 %332, %v309
        %v334 = vpop.permute.xlu0 %333
        %337 = vset.pattern.permute.xlu0 0
        %338 = vperm.xlu0 %337, %v310
        %v339 = vpop.permute.xlu0 %338
        %342 = vset.pattern.permute.xlu0 0
        %343 = vperm.xlu0 %342, %v311
        %v344 = vpop.permute.xlu0 %343
        %347 = vset.pattern.permute.xlu0 0
        %348 = vperm.xlu0 %347, %v312
        %v349 = vpop.permute.xlu0 %348
        %vm351 = vcmask 130048
        %v353 = vsel %vm351, %v327, 0
        %v356 = vsel %vm351, %v328, 0
        %v359 = vsel %vm351, %v329, 0
        %v362 = vsel %vm351, %v330, 0
        %364 = vmatpush.msra.mxu0 0.0
        %365 = vmatpush.msra.mxu0 0.0
        %366 = vmatpush.msra.mxu0 0.0
        %367 = vmatpush.msra.mxu0 0.0
        %368 = vmatpush.msra.mxu0 0.0
        %369 = vmatpush.msra.mxu0 0.0
        %370 = vmatpush.msra.mxu0 0.0
        %371 = vmatpush.msra.mxu0 0.0
        %372 = vmatpush.msra.mxu0 0.0
        %373 = vmatpush.msra.mxu0 0.0
        %374 = vmatpush.msra.mxu0 0.0
        %375 = vmatpush.msra.mxu0 0.0
        %376 = vmatpush.msra.mxu0 0.0
        %377 = vmatpush.msra.mxu0 0.0
        %378 = vmatpush.msra.mxu0 %v307
        %379 = vmatpush.msra.mxu0 %v305
        %380 = vmatmul.f32.gmra.mxu0 %v353
        %v381 = vpop.f32.mrf.mxu0
        %v382 = vadd.f32 %v334, %v381
        %383 = vmatmul.f32.gmra.mxu0 %v356
        %v384 = vpop.f32.mrf.mxu0
        %v385 = vadd.f32 %v339, %v384
        %386 = vmatmul.f32.gmra.mxu0 %v359
        %v387 = vpop.f32.mrf.mxu0
        %v388 = vadd.f32 %v344, %v387
        %389 = vmatmul.f32.gmra.mxu0 %v362
        %v390 = vpop.f32.mrf.mxu0
        %v391 = vadd.f32 %v349, %v390
        %392 = vdwg.mxu0
        %393 = vmatpush.msra.mxu0 0.0
        %394 = vmatpush.msra.mxu0 0.0
        %395 = vmatpush.msra.mxu0 0.0
        %396 = vmatpush.msra.mxu0 0.0
        %397 = vmatpush.msra.mxu0 0.0
        %398 = vmatpush.msra.mxu0 0.0
        %399 = vmatpush.msra.mxu0 0.0
        %400 = vmatpush.msra.mxu0 0.0
        %401 = vmatpush.msra.mxu0 0.0
        %402 = vmatpush.msra.mxu0 0.0
        %403 = vmatpush.msra.mxu0 0.0
        %404 = vmatpush.msra.mxu0 0.0
        %405 = vmatpush.msra.mxu0 0.0
        %406 = vmatpush.msra.mxu0 0.0
        %407 = vmatpush.msra.mxu0 %v308
        %408 = vmatpush.msra.mxu0 %v306
        %409 = vmatmul.f32.gmra.mxu0 %v353
        %v410 = vpop.f32.mrf.mxu0
        %v411 = vadd.f32 %v334, %v410
        %412 = vmatmul.f32.gmra.mxu0 %v356
        %v413 = vpop.f32.mrf.mxu0
        %v414 = vadd.f32 %v339, %v413
        %415 = vmatmul.f32.gmra.mxu0 %v359
        %v416 = vpop.f32.mrf.mxu0
        %v417 = vadd.f32 %v344, %v416
        %418 = vmatmul.f32.gmra.mxu0 %v362
        %v419 = vpop.f32.mrf.mxu0
        %v420 = vadd.f32 %v349, %v419
        %421 = vdwg.mxu0
        %v422 = vand.u32 2147483647, %v382
        %vm423 = vcmp.le.f32.partialorder %v422, 0.7853982
        %vm424 = vcmp.lt.s32.totalorder %v382, 0
        %v425 = vand.u32 %v382, 2139095040
        %v426 = vshrl.u32 %v425, 23
        %v427 = vsub.s32 %v426, 127
        %v428 = vand.u32 2147483647, %v382
        %v429 = vand.u32 %v428, 8388607
        %v430 = vor.u32 %v429, 8388608
        %v431 = vsub.s32 0, %v430
        %v432 = vadd.s32 %v427, 1
        %vm433 = vcmp.gt.s32.totalorder %v432, 0
        %v434 = vsel %vm433, %v432, 0
        %v435 = vshrl.u32 %v434, 5
        %v436 = vand.u32 %v434, 31
        %v437 = vsub.s32 32, %v436
        %v438 = vshrl.u32 683565275, %v437
        %v439 = vshll.u32 683565275, %v436
        %v440 = vshrl.u32 2475754826, %v437
        %v441 = vor.u32 %v439, %v440
        %v442 = vshll.u32 2475754826, %v436
        %v443 = vshrl.u32 2131351028, %v437
        %v444 = vor.u32 %v442, %v443
        %v445 = vshll.u32 2131351028, %v436
        %v446 = vshrl.u32 2102212464, %v437
        %v447 = vor.u32 %v445, %v446
        %v448 = vshll.u32 2102212464, %v436
        %v449 = vshrl.u32 920167782, %v437
        %v450 = vor.u32 %v448, %v449
        %v451 = vshll.u32 920167782, %v436
        %v452 = vshrl.u32 1326507024, %v437
        %v453 = vor.u32 %v451, %v452
        %vm454 = vcmp.lt.s32.totalorder %v435, 1
        %vm455 = vcmp.lt.s32.totalorder %v435, 2
        %vm456 = vcmp.lt.s32.totalorder %v435, 3
        %vm457 = vcmp.lt.s32.totalorder %v435, 4
        %v458 = vsel %vm454, %v438, %v441
        %v459 = vsel %vm457, %v447, 2102212464
        %v460 = vsel %vm456, %v444, %v459
        %v461 = vsel %vm455, %v458, %v460
        %v462 = vsel %vm454, %v441, %v444
        %v463 = vsel %vm457, %v450, 920167782
        %v464 = vsel %vm456, %v447, %v463
        %v465 = vsel %vm455, %v462, %v464
        %v466 = vsel %vm454, %v444, %v447
        %v467 = vsel %vm457, %v453, 1326507024
        %v468 = vsel %vm456, %v450, %v467
        %v469 = vsel %vm455, %v466, %v468
        %v470 = vshll.u32 %v430, 8
        %v471 = vand.u32 %v470, 65535
        %v472 = vshrl.u32 %v470, 16
        %v473 = vand.u32 %v469, 65535
        %v474 = vshrl.u32 %v469, 16
        %v475 = vmul.u32 %v471, %v473
        %v476 = vmul.u32 %v471, %v474
        %v477 = vmul.u32 %v472, %v473
        %v478 = vmul.u32 %v472, %v474
        %v479 = vshll.u32 %v476, 16
        %v480 = vshrl.u32 %v476, 16
        %v481 = vshll.u32 %v477, 16
        %v482 = vshrl.u32 %v477, 16
        %vm483 = vc.u32 %v475, %v479
        %v484 = vsel %vm483, 1, 0
        %v485 = vadd.s32 %v475, %v479
        %v486 = vadd.s32 %v478, %v484
        %vm487 = vc.u32 %v485, %v481
        %v488 = vsel %vm487, 1, 0
        %v489 = vadd.s32 %v485, %v481
        %v490 = vadd.s32 %v486, %v488
        %v491 = vadd.s32 %v490, %v480
        %v492 = vadd.s32 %v491, %v482
        %v493 = vand.u32 %v470, 65535
        %v494 = vshrl.u32 %v470, 16
        %v495 = vand.u32 %v465, 65535
        %v496 = vshrl.u32 %v465, 16
        %v497 = vmul.u32 %v493, %v495
        %v498 = vmul.u32 %v493, %v496
        %v499 = vmul.u32 %v494, %v495
        %v500 = vmul.u32 %v494, %v496
        %v501 = vshll.u32 %v498, 16
        %v502 = vshrl.u32 %v498, 16
        %v503 = vshll.u32 %v499, 16
        %v504 = vshrl.u32 %v499, 16
        %vm505 = vc.u32 %v497, %v501
        %v506 = vsel %vm505, 1, 0
        %v507 = vadd.s32 %v497, %v501
        %v508 = vadd.s32 %v500, %v506
        %vm509 = vc.u32 %v507, %v503
        %v510 = vsel %vm509, 1, 0
        %v511 = vadd.s32 %v507, %v503
        %v512 = vadd.s32 %v508, %v510
        %v513 = vadd.s32 %v512, %v502
        %v514 = vadd.s32 %v513, %v504
        %v515 = vmul.u32 %v470, %v461
        %v516 = vadd.s32 %v492, %v511
        %vm517 = vc.u32 %v492, %v511
        %v518 = vadd.s32 %v514, 1
        %v519 = vsel %vm517, %v518, %v514
        %v520 = vadd.s32 %v515, %v519
        %v521 = vadd.s32 %v520, 536870912
        %v522 = vshrl.u32 %v521, 30
        %v523 = vshll.u32 %v522, 30
        %v524 = vsub.s32 %v520, %v523
        %vm525 = vcmp.lt.s32.totalorder %v524, 0
        %v526 = vsub.s32 0, %v524
        %v527 = vsel %vm525, %v526, %v524
        %v528 = vclz %v527
        %v529 = vsub.s32 %v528, 2
        %vm530 = vcmp.gt.s32.totalorder 0, %v529
        %v531 = vsel %vm530, 0, %v529
        %v532 = vsub.s32 32, %v531
        %v533 = vshll.u32 %v524, %v531
        %v534 = vshrl.u32 %v516, %v532
        %v535 = vor.u32 %v533, %v534
        %v536 = vsub.s32 4294967266, %v531
        %v537 = vadd.s32 %v536, 127
        %v538 = vshll.u32 %v537, 23
        %v539 = vor.u32 4788187, %v538
        %v540 = vand.u32 2147483647, %v539
        %v542 = vcvt.s32.f32 %v535
        %v543 = vmul.f32 %v542, %v540
        %v544 = vxor.u32 %v543, 2147483648
        %v545 = vsel %vm424, %v544, %v543
        %v546 = vsub.s32 4, %v522
        %v547 = vsel %vm424, %v546, %v522
        %v548 = vsel %vm423, %v382, %v545
        %v549 = vsel %vm423, 0, %v547
        %v550 = vmul.f32 %v548, %v548
        %v551 = vmul.f32 %v550, -0.001358992
        %v552 = vadd.f32 %v551, 0.041655596
        %v553 = vmul.f32 %v550, %v552
        %v554 = vadd.f32 %v553, -0.4999988
        %v555 = vmul.f32 %v550, %v554
        %v556 = vadd.f32 1.0, %v555
        %v557 = vmul.f32 %v548, %v548
        %v558 = vmul.f32 %v557, -0.00019511016
        %v559 = vadd.f32 %v558, 0.008332121
        %v560 = vmul.f32 %v557, %v559
        %v561 = vadd.f32 %v560, -0.16666654
        %v562 = vmul.f32 %v557, %v561
        %v563 = vadd.f32 %v562, 1.0
        %v564 = vmul.f32 %v563, %v548
        %vm565 = vweird.f32 %v382
        %v566 = vand.u32 %v549, 3
        %vm567 = vcmp.lt.s32.totalorder %v566, 2
        %vm568 = vcmp.eq.s32.totalorder %v566, 0
        %v569 = vxor.u32 %v564, 2147483648
        %v570 = vsel %vm568, %v556, %v569
        %vm571 = vcmp.eq.s32.totalorder %v566, 2
        %v572 = vxor.u32 %v556, 2147483648
        %v573 = vsel %vm571, %v572, %v564
        %v574 = vsel %vm567, %v570, %v573
        %v575 = vsel %vm565, nan, %v574
        %v576 = vand.u32 2147483647, %v411
        %vm577 = vcmp.le.f32.partialorder %v576, 0.7853982
        %vm578 = vcmp.lt.s32.totalorder %v411, 0
        %v579 = vand.u32 %v411, 2139095040
        %v580 = vshrl.u32 %v579, 23
        %v581 = vsub.s32 %v580, 127
        %v582 = vand.u32 2147483647, %v411
        %v583 = vand.u32 %v582, 8388607
        %v584 = vor.u32 %v583, 8388608
        %v585 = vsub.s32 0, %v584
        %v586 = vadd.s32 %v581, 1
        %vm587 = vcmp.gt.s32.totalorder %v586, 0
        %v588 = vsel %vm587, %v586, 0
        %v589 = vshrl.u32 %v588, 5
        %v590 = vand.u32 %v588, 31
        %v591 = vsub.s32 32, %v590
        %v592 = vshrl.u32 683565275, %v591
        %v593 = vshll.u32 683565275, %v590
        %v594 = vshrl.u32 2475754826, %v591
        %v595 = vor.u32 %v593, %v594
        %v596 = vshll.u32 2475754826, %v590
        %v597 = vshrl.u32 2131351028, %v591
        %v598 = vor.u32 %v596, %v597
        %v599 = vshll.u32 2131351028, %v590
        %v600 = vshrl.u32 2102212464, %v591
        %v601 = vor.u32 %v599, %v600
        %v602 = vshll.u32 2102212464, %v590
        %v603 = vshrl.u32 920167782, %v591
        %v604 = vor.u32 %v602, %v603
        %v605 = vshll.u32 920167782, %v590
        %v606 = vshrl.u32 1326507024, %v591
        %v607 = vor.u32 %v605, %v606
        %vm608 = vcmp.lt.s32.totalorder %v589, 1
        %vm609 = vcmp.lt.s32.totalorder %v589, 2
        %vm610 = vcmp.lt.s32.totalorder %v589, 3
        %vm611 = vcmp.lt.s32.totalorder %v589, 4
        %v612 = vsel %vm608, %v592, %v595
        %v613 = vsel %vm611, %v601, 2102212464
        %v614 = vsel %vm610, %v598, %v613
        %v615 = vsel %vm609, %v612, %v614
        %v616 = vsel %vm608, %v595, %v598
        %v617 = vsel %vm611, %v604, 920167782
        %v618 = vsel %vm610, %v601, %v617
        %v619 = vsel %vm609, %v616, %v618
        %v620 = vsel %vm608, %v598, %v601
        %v621 = vsel %vm611, %v607, 1326507024
        %v622 = vsel %vm610, %v604, %v621
        %v623 = vsel %vm609, %v620, %v622
        %v624 = vshll.u32 %v584, 8
        %v625 = vand.u32 %v624, 65535
        %v626 = vshrl.u32 %v624, 16
        %v627 = vand.u32 %v623, 65535
        %v628 = vshrl.u32 %v623, 16
        %v629 = vmul.u32 %v625, %v627
        %v630 = vmul.u32 %v625, %v628
        %v631 = vmul.u32 %v626, %v627
        %v632 = vmul.u32 %v626, %v628
        %v633 = vshll.u32 %v630, 16
        %v634 = vshrl.u32 %v630, 16
        %v635 = vshll.u32 %v631, 16
        %v636 = vshrl.u32 %v631, 16
        %vm637 = vc.u32 %v629, %v633
        %v638 = vsel %vm637, 1, 0
        %v639 = vadd.s32 %v629, %v633
        %v640 = vadd.s32 %v632, %v638
        %vm641 = vc.u32 %v639, %v635
        %v642 = vsel %vm641, 1, 0
        %v643 = vadd.s32 %v639, %v635
        %v644 = vadd.s32 %v640, %v642
        %v645 = vadd.s32 %v644, %v634
        %v646 = vadd.s32 %v645, %v636
        %v647 = vand.u32 %v624, 65535
        %v648 = vshrl.u32 %v624, 16
        %v649 = vand.u32 %v619, 65535
        %v650 = vshrl.u32 %v619, 16
        %v651 = vmul.u32 %v647, %v649
        %v652 = vmul.u32 %v647, %v650
        %v653 = vmul.u32 %v648, %v649
        %v654 = vmul.u32 %v648, %v650
        %v655 = vshll.u32 %v652, 16
        %v656 = vshrl.u32 %v652, 16
        %v657 = vshll.u32 %v653, 16
        %v658 = vshrl.u32 %v653, 16
        %vm659 = vc.u32 %v651, %v655
        %v660 = vsel %vm659, 1, 0
        %v661 = vadd.s32 %v651, %v655
        %v662 = vadd.s32 %v654, %v660
        %vm663 = vc.u32 %v661, %v657
        %v664 = vsel %vm663, 1, 0
        %v665 = vadd.s32 %v661, %v657
        %v666 = vadd.s32 %v662, %v664
        %v667 = vadd.s32 %v666, %v656
        %v668 = vadd.s32 %v667, %v658
        %v669 = vmul.u32 %v624, %v615
        %v670 = vadd.s32 %v646, %v665
        %vm671 = vc.u32 %v646, %v665
        %v672 = vadd.s32 %v668, 1
        %v673 = vsel %vm671, %v672, %v668
        %v674 = vadd.s32 %v669, %v673
        %v675 = vadd.s32 %v674, 536870912
        %v676 = vshrl.u32 %v675, 30
        %v677 = vshll.u32 %v676, 30
        %v678 = vsub.s32 %v674, %v677
        %vm679 = vcmp.lt.s32.totalorder %v678, 0
        %v680 = vsub.s32 0, %v678
        %v681 = vsel %vm679, %v680, %v678
        %v682 = vclz %v681
        %v683 = vsub.s32 %v682, 2
        %vm684 = vcmp.gt.s32.totalorder 0, %v683
        %v685 = vsel %vm684, 0, %v683
        %v686 = vsub.s32 32, %v685
        %v687 = vshll.u32 %v678, %v685
        %v688 = vshrl.u32 %v670, %v686
        %v689 = vor.u32 %v687, %v688
        %v690 = vsub.s32 4294967266, %v685
        %v691 = vadd.s32 %v690, 127
        %v692 = vshll.u32 %v691, 23
        %v693 = vor.u32 4788187, %v692
        %v694 = vand.u32 2147483647, %v693
        %v696 = vcvt.s32.f32 %v689
        %v697 = vmul.f32 %v696, %v694
        %v698 = vxor.u32 %v697, 2147483648
        %v699 = vsel %vm578, %v698, %v697
        %v700 = vsub.s32 4, %v676
        %v701 = vsel %vm578, %v700, %v676
        %v702 = vsel %vm577, %v411, %v699
        %v703 = vsel %vm577, 0, %v701
        %v704 = vmul.f32 %v702, %v702
        %v705 = vmul.f32 %v704, -0.001358992
        %v706 = vadd.f32 %v705, 0.041655596
        %v707 = vmul.f32 %v704, %v706
        %v708 = vadd.f32 %v707, -0.4999988
        %v709 = vmul.f32 %v704, %v708
        %v710 = vadd.f32 1.0, %v709
        %v711 = vmul.f32 %v702, %v702
        %v712 = vmul.f32 %v711, -0.00019511016
        %v713 = vadd.f32 %v712, 0.008332121
        %v714 = vmul.f32 %v711, %v713
        %v715 = vadd.f32 %v714, -0.16666654
        %v716 = vmul.f32 %v711, %v715
        %v717 = vadd.f32 %v716, 1.0
        %v718 = vmul.f32 %v717, %v702
        %vm719 = vweird.f32 %v411
        %v720 = vand.u32 %v703, 3
        %vm721 = vcmp.lt.s32.totalorder %v720, 2
        %vm722 = vcmp.eq.s32.totalorder %v720, 0
        %v723 = vxor.u32 %v718, 2147483648
        %v724 = vsel %vm722, %v710, %v723
        %vm725 = vcmp.eq.s32.totalorder %v720, 2
        %v726 = vxor.u32 %v710, 2147483648
        %v727 = vsel %vm725, %v726, %v718
        %v728 = vsel %vm721, %v724, %v727
        %v729 = vsel %vm719, nan, %v728
        %v730 = vand.u32 2147483647, %v385
        %vm731 = vcmp.le.f32.partialorder %v730, 0.7853982
        %vm732 = vcmp.lt.s32.totalorder %v385, 0
        %v733 = vand.u32 %v385, 2139095040
        %v734 = vshrl.u32 %v733, 23
        %v735 = vsub.s32 %v734, 127
        %v736 = vand.u32 2147483647, %v385
        %v737 = vand.u32 %v736, 8388607
        %v738 = vor.u32 %v737, 8388608
        %v739 = vsub.s32 0, %v738
        %v740 = vadd.s32 %v735, 1
        %vm741 = vcmp.gt.s32.totalorder %v740, 0
        %v742 = vsel %vm741, %v740, 0
        %v743 = vshrl.u32 %v742, 5
        %v744 = vand.u32 %v742, 31
        %v745 = vsub.s32 32, %v744
        %v746 = vshrl.u32 683565275, %v745
        %v747 = vshll.u32 683565275, %v744
        %v748 = vshrl.u32 2475754826, %v745
        %v749 = vor.u32 %v747, %v748
        %v750 = vshll.u32 2475754826, %v744
        %v751 = vshrl.u32 2131351028, %v745
        %v752 = vor.u32 %v750, %v751
        %v753 = vshll.u32 2131351028, %v744
        %v754 = vshrl.u32 2102212464, %v745
        %v755 = vor.u32 %v753, %v754
        %v756 = vshll.u32 2102212464, %v744
        %v757 = vshrl.u32 920167782, %v745
        %v758 = vor.u32 %v756, %v757
        %v759 = vshll.u32 920167782, %v744
        %v760 = vshrl.u32 1326507024, %v745
        %v761 = vor.u32 %v759, %v760
        %vm762 = vcmp.lt.s32.totalorder %v743, 1
        %vm763 = vcmp.lt.s32.totalorder %v743, 2
        %vm764 = vcmp.lt.s32.totalorder %v743, 3
        %vm765 = vcmp.lt.s32.totalorder %v743, 4
        %v766 = vsel %vm762, %v746, %v749
        %v767 = vsel %vm765, %v755, 2102212464
        %v768 = vsel %vm764, %v752, %v767
        %v769 = vsel %vm763, %v766, %v768
        %v770 = vsel %vm762, %v749, %v752
        %v771 = vsel %vm765, %v758, 920167782
        %v772 = vsel %vm764, %v755, %v771
        %v773 = vsel %vm763, %v770, %v772
        %v774 = vsel %vm762, %v752, %v755
        %v775 = vsel %vm765, %v761, 1326507024
        %v776 = vsel %vm764, %v758, %v775
        %v777 = vsel %vm763, %v774, %v776
        %v778 = vshll.u32 %v738, 8
        %v779 = vand.u32 %v778, 65535
        %v780 = vshrl.u32 %v778, 16
        %v781 = vand.u32 %v777, 65535
        %v782 = vshrl.u32 %v777, 16
        %v783 = vmul.u32 %v779, %v781
        %v784 = vmul.u32 %v779, %v782
        %v785 = vmul.u32 %v780, %v781
        %v786 = vmul.u32 %v780, %v782
        %v787 = vshll.u32 %v784, 16
        %v788 = vshrl.u32 %v784, 16
        %v789 = vshll.u32 %v785, 16
        %v790 = vshrl.u32 %v785, 16
        %vm791 = vc.u32 %v783, %v787
        %v792 = vsel %vm791, 1, 0
        %v793 = vadd.s32 %v783, %v787
        %v794 = vadd.s32 %v786, %v792
        %vm795 = vc.u32 %v793, %v789
        %v796 = vsel %vm795, 1, 0
        %v797 = vadd.s32 %v793, %v789
        %v798 = vadd.s32 %v794, %v796
        %v799 = vadd.s32 %v798, %v788
        %v800 = vadd.s32 %v799, %v790
        %v801 = vand.u32 %v778, 65535
        %v802 = vshrl.u32 %v778, 16
        %v803 = vand.u32 %v773, 65535
        %v804 = vshrl.u32 %v773, 16
        %v805 = vmul.u32 %v801, %v803
        %v806 = vmul.u32 %v801, %v804
        %v807 = vmul.u32 %v802, %v803
        %v808 = vmul.u32 %v802, %v804
        %v809 = vshll.u32 %v806, 16
        %v810 = vshrl.u32 %v806, 16
        %v811 = vshll.u32 %v807, 16
        %v812 = vshrl.u32 %v807, 16
        %vm813 = vc.u32 %v805, %v809
        %v814 = vsel %vm813, 1, 0
        %v815 = vadd.s32 %v805, %v809
        %v816 = vadd.s32 %v808, %v814
        %vm817 = vc.u32 %v815, %v811
        %v818 = vsel %vm817, 1, 0
        %v819 = vadd.s32 %v815, %v811
        %v820 = vadd.s32 %v816, %v818
        %v821 = vadd.s32 %v820, %v810
        %v822 = vadd.s32 %v821, %v812
        %v823 = vmul.u32 %v778, %v769
        %v824 = vadd.s32 %v800, %v819
        %vm825 = vc.u32 %v800, %v819
        %v826 = vadd.s32 %v822, 1
        %v827 = vsel %vm825, %v826, %v822
        %v828 = vadd.s32 %v823, %v827
        %v829 = vadd.s32 %v828, 536870912
        %v830 = vshrl.u32 %v829, 30
        %v831 = vshll.u32 %v830, 30
        %v832 = vsub.s32 %v828, %v831
        %vm833 = vcmp.lt.s32.totalorder %v832, 0
        %v834 = vsub.s32 0, %v832
        %v835 = vsel %vm833, %v834, %v832
        %v836 = vclz %v835
        %v837 = vsub.s32 %v836, 2
        %vm838 = vcmp.gt.s32.totalorder 0, %v837
        %v839 = vsel %vm838, 0, %v837
        %v840 = vsub.s32 32, %v839
        %v841 = vshll.u32 %v832, %v839
        %v842 = vshrl.u32 %v824, %v840
        %v843 = vor.u32 %v841, %v842
        %v844 = vsub.s32 4294967266, %v839
        %v845 = vadd.s32 %v844, 127
        %v846 = vshll.u32 %v845, 23
        %v847 = vor.u32 4788187, %v846
        %v848 = vand.u32 2147483647, %v847
        %v850 = vcvt.s32.f32 %v843
        %v851 = vmul.f32 %v850, %v848
        %v852 = vxor.u32 %v851, 2147483648
        %v853 = vsel %vm732, %v852, %v851
        %v854 = vsub.s32 4, %v830
        %v855 = vsel %vm732, %v854, %v830
        %v856 = vsel %vm731, %v385, %v853
        %v857 = vsel %vm731, 0, %v855
        %v858 = vmul.f32 %v856, %v856
        %v859 = vmul.f32 %v858, -0.001358992
        %v860 = vadd.f32 %v859, 0.041655596
        %v861 = vmul.f32 %v858, %v860
        %v862 = vadd.f32 %v861, -0.4999988
        %v863 = vmul.f32 %v858, %v862
        %v864 = vadd.f32 1.0, %v863
        %v865 = vmul.f32 %v856, %v856
        %v866 = vmul.f32 %v865, -0.00019511016
        %v867 = vadd.f32 %v866, 0.008332121
        %v868 = vmul.f32 %v865, %v867
        %v869 = vadd.f32 %v868, -0.16666654
        %v870 = vmul.f32 %v865, %v869
        %v871 = vadd.f32 %v870, 1.0
        %v872 = vmul.f32 %v871, %v856
        %vm873 = vweird.f32 %v385
        %v874 = vand.u32 %v857, 3
        %vm875 = vcmp.lt.s32.totalorder %v874, 2
        %vm876 = vcmp.eq.s32.totalorder %v874, 0
        %v877 = vxor.u32 %v872, 2147483648
        %v878 = vsel %vm876, %v864, %v877
        %vm879 = vcmp.eq.s32.totalorder %v874, 2
        %v880 = vxor.u32 %v864, 2147483648
        %v881 = vsel %vm879, %v880, %v872
        %v882 = vsel %vm875, %v878, %v881
        %v883 = vsel %vm873, nan, %v882
        %v884 = vand.u32 2147483647, %v414
        %vm885 = vcmp.le.f32.partialorder %v884, 0.7853982
        %vm886 = vcmp.lt.s32.totalorder %v414, 0
        %v887 = vand.u32 %v414, 2139095040
        %v888 = vshrl.u32 %v887, 23
        %v889 = vsub.s32 %v888, 127
        %v890 = vand.u32 2147483647, %v414
        %v891 = vand.u32 %v890, 8388607
        %v892 = vor.u32 %v891, 8388608
        %v893 = vsub.s32 0, %v892
        %v894 = vadd.s32 %v889, 1
        %vm895 = vcmp.gt.s32.totalorder %v894, 0
        %v896 = vsel %vm895, %v894, 0
        %v897 = vshrl.u32 %v896, 5
        %v898 = vand.u32 %v896, 31
        %v899 = vsub.s32 32, %v898
        %v900 = vshrl.u32 683565275, %v899
        %v901 = vshll.u32 683565275, %v898
        %v902 = vshrl.u32 2475754826, %v899
        %v903 = vor.u32 %v901, %v902
        %v904 = vshll.u32 2475754826, %v898
        %v905 = vshrl.u32 2131351028, %v899
        %v906 = vor.u32 %v904, %v905
        %v907 = vshll.u32 2131351028, %v898
        %v908 = vshrl.u32 2102212464, %v899
        %v909 = vor.u32 %v907, %v908
        %v910 = vshll.u32 2102212464, %v898
        %v911 = vshrl.u32 920167782, %v899
        %v912 = vor.u32 %v910, %v911
        %v913 = vshll.u32 920167782, %v898
        %v914 = vshrl.u32 1326507024, %v899
        %v915 = vor.u32 %v913, %v914
        %vm916 = vcmp.lt.s32.totalorder %v897, 1
        %vm917 = vcmp.lt.s32.totalorder %v897, 2
        %vm918 = vcmp.lt.s32.totalorder %v897, 3
        %vm919 = vcmp.lt.s32.totalorder %v897, 4
        %v920 = vsel %vm916, %v900, %v903
        %v921 = vsel %vm919, %v909, 2102212464
        %v922 = vsel %vm918, %v906, %v921
        %v923 = vsel %vm917, %v920, %v922
        %v924 = vsel %vm916, %v903, %v906
        %v925 = vsel %vm919, %v912, 920167782
        %v926 = vsel %vm918, %v909, %v925
        %v927 = vsel %vm917, %v924, %v926
        %v928 = vsel %vm916, %v906, %v909
        %v929 = vsel %vm919, %v915, 1326507024
        %v930 = vsel %vm918, %v912, %v929
        %v931 = vsel %vm917, %v928, %v930
        %v932 = vshll.u32 %v892, 8
        %v933 = vand.u32 %v932, 65535
        %v934 = vshrl.u32 %v932, 16
        %v935 = vand.u32 %v931, 65535
        %v936 = vshrl.u32 %v931, 16
        %v937 = vmul.u32 %v933, %v935
        %v938 = vmul.u32 %v933, %v936
        %v939 = vmul.u32 %v934, %v935
        %v940 = vmul.u32 %v934, %v936
        %v941 = vshll.u32 %v938, 16
        %v942 = vshrl.u32 %v938, 16
        %v943 = vshll.u32 %v939, 16
        %v944 = vshrl.u32 %v939, 16
        %vm945 = vc.u32 %v937, %v941
        %v946 = vsel %vm945, 1, 0
        %v947 = vadd.s32 %v937, %v941
        %v948 = vadd.s32 %v940, %v946
        %vm949 = vc.u32 %v947, %v943
        %v950 = vsel %vm949, 1, 0
        %v951 = vadd.s32 %v947, %v943
        %v952 = vadd.s32 %v948, %v950
        %v953 = vadd.s32 %v952, %v942
        %v954 = vadd.s32 %v953, %v944
        %v955 = vand.u32 %v932, 65535
        %v956 = vshrl.u32 %v932, 16
        %v957 = vand.u32 %v927, 65535
        %v958 = vshrl.u32 %v927, 16
        %v959 = vmul.u32 %v955, %v957
        %v960 = vmul.u32 %v955, %v958
        %v961 = vmul.u32 %v956, %v957
        %v962 = vmul.u32 %v956, %v958
        %v963 = vshll.u32 %v960, 16
        %v964 = vshrl.u32 %v960, 16
        %v965 = vshll.u32 %v961, 16
        %v966 = vshrl.u32 %v961, 16
        %vm967 = vc.u32 %v959, %v963
        %v968 = vsel %vm967, 1, 0
        %v969 = vadd.s32 %v959, %v963
        %v970 = vadd.s32 %v962, %v968
        %vm971 = vc.u32 %v969, %v965
        %v972 = vsel %vm971, 1, 0
        %v973 = vadd.s32 %v969, %v965
        %v974 = vadd.s32 %v970, %v972
        %v975 = vadd.s32 %v974, %v964
        %v976 = vadd.s32 %v975, %v966
        %v977 = vmul.u32 %v932, %v923
        %v978 = vadd.s32 %v954, %v973
        %vm979 = vc.u32 %v954, %v973
        %v980 = vadd.s32 %v976, 1
        %v981 = vsel %vm979, %v980, %v976
        %v982 = vadd.s32 %v977, %v981
        %v983 = vadd.s32 %v982, 536870912
        %v984 = vshrl.u32 %v983, 30
        %v985 = vshll.u32 %v984, 30
        %v986 = vsub.s32 %v982, %v985
        %vm987 = vcmp.lt.s32.totalorder %v986, 0
        %v988 = vsub.s32 0, %v986
        %v989 = vsel %vm987, %v988, %v986
        %v990 = vclz %v989
        %v991 = vsub.s32 %v990, 2
        %vm992 = vcmp.gt.s32.totalorder 0, %v991
        %v993 = vsel %vm992, 0, %v991
        %v994 = vsub.s32 32, %v993
        %v995 = vshll.u32 %v986, %v993
        %v996 = vshrl.u32 %v978, %v994
        %v997 = vor.u32 %v995, %v996
        %v998 = vsub.s32 4294967266, %v993
        %v999 = vadd.s32 %v998, 127
        %v1000 = vshll.u32 %v999, 23
        %v1001 = vor.u32 4788187, %v1000
        %v1002 = vand.u32 2147483647, %v1001
        %v1004 = vcvt.s32.f32 %v997
        %v1005 = vmul.f32 %v1004, %v1002
        %v1006 = vxor.u32 %v1005, 2147483648
        %v1007 = vsel %vm886, %v1006, %v1005
        %v1008 = vsub.s32 4, %v984
        %v1009 = vsel %vm886, %v1008, %v984
        %v1010 = vsel %vm885, %v414, %v1007
        %v1011 = vsel %vm885, 0, %v1009
        %v1012 = vmul.f32 %v1010, %v1010
        %v1013 = vmul.f32 %v1012, -0.001358992
        %v1014 = vadd.f32 %v1013, 0.041655596
        %v1015 = vmul.f32 %v1012, %v1014
        %v1016 = vadd.f32 %v1015, -0.4999988
        %v1017 = vmul.f32 %v1012, %v1016
        %v1018 = vadd.f32 1.0, %v1017
        %v1019 = vmul.f32 %v1010, %v1010
        %v1020 = vmul.f32 %v1019, -0.00019511016
        %v1021 = vadd.f32 %v1020, 0.008332121
        %v1022 = vmul.f32 %v1019, %v1021
        %v1023 = vadd.f32 %v1022, -0.16666654
        %v1024 = vmul.f32 %v1019, %v1023
        %v1025 = vadd.f32 %v1024, 1.0
        %v1026 = vmul.f32 %v1025, %v1010
        %vm1027 = vweird.f32 %v414
        %v1028 = vand.u32 %v1011, 3
        %vm1029 = vcmp.lt.s32.totalorder %v1028, 2
        %vm1030 = vcmp.eq.s32.totalorder %v1028, 0
        %v1031 = vxor.u32 %v1026, 2147483648
        %v1032 = vsel %vm1030, %v1018, %v1031
        %vm1033 = vcmp.eq.s32.totalorder %v1028, 2
        %v1034 = vxor.u32 %v1018, 2147483648
        %v1035 = vsel %vm1033, %v1034, %v1026
        %v1036 = vsel %vm1029, %v1032, %v1035
        %v1037 = vsel %vm1027, nan, %v1036
        %v1038 = vand.u32 2147483647, %v388
        %vm1039 = vcmp.le.f32.partialorder %v1038, 0.7853982
        %vm1040 = vcmp.lt.s32.totalorder %v388, 0
        %v1041 = vand.u32 %v388, 2139095040
        %v1042 = vshrl.u32 %v1041, 23
        %v1043 = vsub.s32 %v1042, 127
        %v1044 = vand.u32 2147483647, %v388
        %v1045 = vand.u32 %v1044, 8388607
        %v1046 = vor.u32 %v1045, 8388608
        %v1047 = vsub.s32 0, %v1046
        %v1048 = vadd.s32 %v1043, 1
        %vm1049 = vcmp.gt.s32.totalorder %v1048, 0
        %v1050 = vsel %vm1049, %v1048, 0
        %v1051 = vshrl.u32 %v1050, 5
        %v1052 = vand.u32 %v1050, 31
        %v1053 = vsub.s32 32, %v1052
        %v1054 = vshrl.u32 683565275, %v1053
        %v1055 = vshll.u32 683565275, %v1052
        %v1056 = vshrl.u32 2475754826, %v1053
        %v1057 = vor.u32 %v1055, %v1056
        %v1058 = vshll.u32 2475754826, %v1052
        %v1059 = vshrl.u32 2131351028, %v1053
        %v1060 = vor.u32 %v1058, %v1059
        %v1061 = vshll.u32 2131351028, %v1052
        %v1062 = vshrl.u32 2102212464, %v1053
        %v1063 = vor.u32 %v1061, %v1062
        %v1064 = vshll.u32 2102212464, %v1052
        %v1065 = vshrl.u32 920167782, %v1053
        %v1066 = vor.u32 %v1064, %v1065
        %v1067 = vshll.u32 920167782, %v1052
        %v1068 = vshrl.u32 1326507024, %v1053
        %v1069 = vor.u32 %v1067, %v1068
        %vm1070 = vcmp.lt.s32.totalorder %v1051, 1
        %vm1071 = vcmp.lt.s32.totalorder %v1051, 2
        %vm1072 = vcmp.lt.s32.totalorder %v1051, 3
        %vm1073 = vcmp.lt.s32.totalorder %v1051, 4
        %v1074 = vsel %vm1070, %v1054, %v1057
        %v1075 = vsel %vm1073, %v1063, 2102212464
        %v1076 = vsel %vm1072, %v1060, %v1075
        %v1077 = vsel %vm1071, %v1074, %v1076
        %v1078 = vsel %vm1070, %v1057, %v1060
        %v1079 = vsel %vm1073, %v1066, 920167782
        %v1080 = vsel %vm1072, %v1063, %v1079
        %v1081 = vsel %vm1071, %v1078, %v1080
        %v1082 = vsel %vm1070, %v1060, %v1063
        %v1083 = vsel %vm1073, %v1069, 1326507024
        %v1084 = vsel %vm1072, %v1066, %v1083
        %v1085 = vsel %vm1071, %v1082, %v1084
        %v1086 = vshll.u32 %v1046, 8
        %v1087 = vand.u32 %v1086, 65535
        %v1088 = vshrl.u32 %v1086, 16
        %v1089 = vand.u32 %v1085, 65535
        %v1090 = vshrl.u32 %v1085, 16
        %v1091 = vmul.u32 %v1087, %v1089
        %v1092 = vmul.u32 %v1087, %v1090
        %v1093 = vmul.u32 %v1088, %v1089
        %v1094 = vmul.u32 %v1088, %v1090
        %v1095 = vshll.u32 %v1092, 16
        %v1096 = vshrl.u32 %v1092, 16
        %v1097 = vshll.u32 %v1093, 16
        %v1098 = vshrl.u32 %v1093, 16
        %vm1099 = vc.u32 %v1091, %v1095
        %v1100 = vsel %vm1099, 1, 0
        %v1101 = vadd.s32 %v1091, %v1095
        %v1102 = vadd.s32 %v1094, %v1100
        %vm1103 = vc.u32 %v1101, %v1097
        %v1104 = vsel %vm1103, 1, 0
        %v1105 = vadd.s32 %v1101, %v1097
        %v1106 = vadd.s32 %v1102, %v1104
        %v1107 = vadd.s32 %v1106, %v1096
        %v1108 = vadd.s32 %v1107, %v1098
        %v1109 = vand.u32 %v1086, 65535
        %v1110 = vshrl.u32 %v1086, 16
        %v1111 = vand.u32 %v1081, 65535
        %v1112 = vshrl.u32 %v1081, 16
        %v1113 = vmul.u32 %v1109, %v1111
        %v1114 = vmul.u32 %v1109, %v1112
        %v1115 = vmul.u32 %v1110, %v1111
        %v1116 = vmul.u32 %v1110, %v1112
        %v1117 = vshll.u32 %v1114, 16
        %v1118 = vshrl.u32 %v1114, 16
        %v1119 = vshll.u32 %v1115, 16
        %v1120 = vshrl.u32 %v1115, 16
        %vm1121 = vc.u32 %v1113, %v1117
        %v1122 = vsel %vm1121, 1, 0
        %v1123 = vadd.s32 %v1113, %v1117
        %v1124 = vadd.s32 %v1116, %v1122
        %vm1125 = vc.u32 %v1123, %v1119
        %v1126 = vsel %vm1125, 1, 0
        %v1127 = vadd.s32 %v1123, %v1119
        %v1128 = vadd.s32 %v1124, %v1126
        %v1129 = vadd.s32 %v1128, %v1118
        %v1130 = vadd.s32 %v1129, %v1120
        %v1131 = vmul.u32 %v1086, %v1077
        %v1132 = vadd.s32 %v1108, %v1127
        %vm1133 = vc.u32 %v1108, %v1127
        %v1134 = vadd.s32 %v1130, 1
        %v1135 = vsel %vm1133, %v1134, %v1130
        %v1136 = vadd.s32 %v1131, %v1135
        %v1137 = vadd.s32 %v1136, 536870912
        %v1138 = vshrl.u32 %v1137, 30
        %v1139 = vshll.u32 %v1138, 30
        %v1140 = vsub.s32 %v1136, %v1139
        %vm1141 = vcmp.lt.s32.totalorder %v1140, 0
        %v1142 = vsub.s32 0, %v1140
        %v1143 = vsel %vm1141, %v1142, %v1140
        %v1144 = vclz %v1143
        %v1145 = vsub.s32 %v1144, 2
        %vm1146 = vcmp.gt.s32.totalorder 0, %v1145
        %v1147 = vsel %vm1146, 0, %v1145
        %v1148 = vsub.s32 32, %v1147
        %v1149 = vshll.u32 %v1140, %v1147
        %v1150 = vshrl.u32 %v1132, %v1148
        %v1151 = vor.u32 %v1149, %v1150
        %v1152 = vsub.s32 4294967266, %v1147
        %v1153 = vadd.s32 %v1152, 127
        %v1154 = vshll.u32 %v1153, 23
        %v1155 = vor.u32 4788187, %v1154
        %v1156 = vand.u32 2147483647, %v1155
        %v1158 = vcvt.s32.f32 %v1151
        %v1159 = vmul.f32 %v1158, %v1156
        %v1160 = vxor.u32 %v1159, 2147483648
        %v1161 = vsel %vm1040, %v1160, %v1159
        %v1162 = vsub.s32 4, %v1138
        %v1163 = vsel %vm1040, %v1162, %v1138
        %v1164 = vsel %vm1039, %v388, %v1161
        %v1165 = vsel %vm1039, 0, %v1163
        %v1166 = vmul.f32 %v1164, %v1164
        %v1167 = vmul.f32 %v1166, -0.001358992
        %v1168 = vadd.f32 %v1167, 0.041655596
        %v1169 = vmul.f32 %v1166, %v1168
        %v1170 = vadd.f32 %v1169, -0.4999988
        %v1171 = vmul.f32 %v1166, %v1170
        %v1172 = vadd.f32 1.0, %v1171
        %v1173 = vmul.f32 %v1164, %v1164
        %v1174 = vmul.f32 %v1173, -0.00019511016
        %v1175 = vadd.f32 %v1174, 0.008332121
        %v1176 = vmul.f32 %v1173, %v1175
        %v1177 = vadd.f32 %v1176, -0.16666654
        %v1178 = vmul.f32 %v1173, %v1177
        %v1179 = vadd.f32 %v1178, 1.0
        %v1180 = vmul.f32 %v1179, %v1164
        %vm1181 = vweird.f32 %v388
        %v1182 = vand.u32 %v1165, 3
        %vm1183 = vcmp.lt.s32.totalorder %v1182, 2
        %vm1184 = vcmp.eq.s32.totalorder %v1182, 0
        %v1185 = vxor.u32 %v1180, 2147483648
        %v1186 = vsel %vm1184, %v1172, %v1185
        %vm1187 = vcmp.eq.s32.totalorder %v1182, 2
        %v1188 = vxor.u32 %v1172, 2147483648
        %v1189 = vsel %vm1187, %v1188, %v1180
        %v1190 = vsel %vm1183, %v1186, %v1189
        %v1191 = vsel %vm1181, nan, %v1190
        %v1192 = vand.u32 2147483647, %v417
        %vm1193 = vcmp.le.f32.partialorder %v1192, 0.7853982
        %vm1194 = vcmp.lt.s32.totalorder %v417, 0
        %v1195 = vand.u32 %v417, 2139095040
        %v1196 = vshrl.u32 %v1195, 23
        %v1197 = vsub.s32 %v1196, 127
        %v1198 = vand.u32 2147483647, %v417
        %v1199 = vand.u32 %v1198, 8388607
        %v1200 = vor.u32 %v1199, 8388608
        %v1201 = vsub.s32 0, %v1200
        %v1202 = vadd.s32 %v1197, 1
        %vm1203 = vcmp.gt.s32.totalorder %v1202, 0
        %v1204 = vsel %vm1203, %v1202, 0
        %v1205 = vshrl.u32 %v1204, 5
        %v1206 = vand.u32 %v1204, 31
        %v1207 = vsub.s32 32, %v1206
        %v1208 = vshrl.u32 683565275, %v1207
        %v1209 = vshll.u32 683565275, %v1206
        %v1210 = vshrl.u32 2475754826, %v1207
        %v1211 = vor.u32 %v1209, %v1210
        %v1212 = vshll.u32 2475754826, %v1206
        %v1213 = vshrl.u32 2131351028, %v1207
        %v1214 = vor.u32 %v1212, %v1213
        %v1215 = vshll.u32 2131351028, %v1206
        %v1216 = vshrl.u32 2102212464, %v1207
        %v1217 = vor.u32 %v1215, %v1216
        %v1218 = vshll.u32 2102212464, %v1206
        %v1219 = vshrl.u32 920167782, %v1207
        %v1220 = vor.u32 %v1218, %v1219
        %v1221 = vshll.u32 920167782, %v1206
        %v1222 = vshrl.u32 1326507024, %v1207
        %v1223 = vor.u32 %v1221, %v1222
        %vm1224 = vcmp.lt.s32.totalorder %v1205, 1
        %vm1225 = vcmp.lt.s32.totalorder %v1205, 2
        %vm1226 = vcmp.lt.s32.totalorder %v1205, 3
        %vm1227 = vcmp.lt.s32.totalorder %v1205, 4
        %v1228 = vsel %vm1224, %v1208, %v1211
        %v1229 = vsel %vm1227, %v1217, 2102212464
        %v1230 = vsel %vm1226, %v1214, %v1229
        %v1231 = vsel %vm1225, %v1228, %v1230
        %v1232 = vsel %vm1224, %v1211, %v1214
        %v1233 = vsel %vm1227, %v1220, 920167782
        %v1234 = vsel %vm1226, %v1217, %v1233
        %v1235 = vsel %vm1225, %v1232, %v1234
        %v1236 = vsel %vm1224, %v1214, %v1217
        %v1237 = vsel %vm1227, %v1223, 1326507024
        %v1238 = vsel %vm1226, %v1220, %v1237
        %v1239 = vsel %vm1225, %v1236, %v1238
        %v1240 = vshll.u32 %v1200, 8
        %v1241 = vand.u32 %v1240, 65535
        %v1242 = vshrl.u32 %v1240, 16
        %v1243 = vand.u32 %v1239, 65535
        %v1244 = vshrl.u32 %v1239, 16
        %v1245 = vmul.u32 %v1241, %v1243
        %v1246 = vmul.u32 %v1241, %v1244
        %v1247 = vmul.u32 %v1242, %v1243
        %v1248 = vmul.u32 %v1242, %v1244
        %v1249 = vshll.u32 %v1246, 16
        %v1250 = vshrl.u32 %v1246, 16
        %v1251 = vshll.u32 %v1247, 16
        %v1252 = vshrl.u32 %v1247, 16
        %vm1253 = vc.u32 %v1245, %v1249
        %v1254 = vsel %vm1253, 1, 0
        %v1255 = vadd.s32 %v1245, %v1249
        %v1256 = vadd.s32 %v1248, %v1254
        %vm1257 = vc.u32 %v1255, %v1251
        %v1258 = vsel %vm1257, 1, 0
        %v1259 = vadd.s32 %v1255, %v1251
        %v1260 = vadd.s32 %v1256, %v1258
        %v1261 = vadd.s32 %v1260, %v1250
        %v1262 = vadd.s32 %v1261, %v1252
        %v1263 = vand.u32 %v1240, 65535
        %v1264 = vshrl.u32 %v1240, 16
        %v1265 = vand.u32 %v1235, 65535
        %v1266 = vshrl.u32 %v1235, 16
        %v1267 = vmul.u32 %v1263, %v1265
        %v1268 = vmul.u32 %v1263, %v1266
        %v1269 = vmul.u32 %v1264, %v1265
        %v1270 = vmul.u32 %v1264, %v1266
        %v1271 = vshll.u32 %v1268, 16
        %v1272 = vshrl.u32 %v1268, 16
        %v1273 = vshll.u32 %v1269, 16
        %v1274 = vshrl.u32 %v1269, 16
        %vm1275 = vc.u32 %v1267, %v1271
        %v1276 = vsel %vm1275, 1, 0
        %v1277 = vadd.s32 %v1267, %v1271
        %v1278 = vadd.s32 %v1270, %v1276
        %vm1279 = vc.u32 %v1277, %v1273
        %v1280 = vsel %vm1279, 1, 0
        %v1281 = vadd.s32 %v1277, %v1273
        %v1282 = vadd.s32 %v1278, %v1280
        %v1283 = vadd.s32 %v1282, %v1272
        %v1284 = vadd.s32 %v1283, %v1274
        %v1285 = vmul.u32 %v1240, %v1231
        %v1286 = vadd.s32 %v1262, %v1281
        %vm1287 = vc.u32 %v1262, %v1281
        %v1288 = vadd.s32 %v1284, 1
        %v1289 = vsel %vm1287, %v1288, %v1284
        %v1290 = vadd.s32 %v1285, %v1289
        %v1291 = vadd.s32 %v1290, 536870912
        %v1292 = vshrl.u32 %v1291, 30
        %v1293 = vshll.u32 %v1292, 30
        %v1294 = vsub.s32 %v1290, %v1293
        %vm1295 = vcmp.lt.s32.totalorder %v1294, 0
        %v1296 = vsub.s32 0, %v1294
        %v1297 = vsel %vm1295, %v1296, %v1294
        %v1298 = vclz %v1297
        %v1299 = vsub.s32 %v1298, 2
        %vm1300 = vcmp.gt.s32.totalorder 0, %v1299
        %v1301 = vsel %vm1300, 0, %v1299
        %v1302 = vsub.s32 32, %v1301
        %v1303 = vshll.u32 %v1294, %v1301
        %v1304 = vshrl.u32 %v1286, %v1302
        %v1305 = vor.u32 %v1303, %v1304
        %v1306 = vsub.s32 4294967266, %v1301
        %v1307 = vadd.s32 %v1306, 127
        %v1308 = vshll.u32 %v1307, 23
        %v1309 = vor.u32 4788187, %v1308
        %v1310 = vand.u32 2147483647, %v1309
        %v1312 = vcvt.s32.f32 %v1305
        %v1313 = vmul.f32 %v1312, %v1310
        %v1314 = vxor.u32 %v1313, 2147483648
        %v1315 = vsel %vm1194, %v1314, %v1313
        %v1316 = vsub.s32 4, %v1292
        %v1317 = vsel %vm1194, %v1316, %v1292
        %v1318 = vsel %vm1193, %v417, %v1315
        %v1319 = vsel %vm1193, 0, %v1317
        %v1320 = vmul.f32 %v1318, %v1318
        %v1321 = vmul.f32 %v1320, -0.001358992
        %v1322 = vadd.f32 %v1321, 0.041655596
        %v1323 = vmul.f32 %v1320, %v1322
        %v1324 = vadd.f32 %v1323, -0.4999988
        %v1325 = vmul.f32 %v1320, %v1324
        %v1326 = vadd.f32 1.0, %v1325
        %v1327 = vmul.f32 %v1318, %v1318
        %v1328 = vmul.f32 %v1327, -0.00019511016
        %v1329 = vadd.f32 %v1328, 0.008332121
        %v1330 = vmul.f32 %v1327, %v1329
        %v1331 = vadd.f32 %v1330, -0.16666654
        %v1332 = vmul.f32 %v1327, %v1331
        %v1333 = vadd.f32 %v1332, 1.0
        %v1334 = vmul.f32 %v1333, %v1318
        %vm1335 = vweird.f32 %v417
        %v1336 = vand.u32 %v1319, 3
        %vm1337 = vcmp.lt.s32.totalorder %v1336, 2
        %vm1338 = vcmp.eq.s32.totalorder %v1336, 0
        %v1339 = vxor.u32 %v1334, 2147483648
        %v1340 = vsel %vm1338, %v1326, %v1339
        %vm1341 = vcmp.eq.s32.totalorder %v1336, 2
        %v1342 = vxor.u32 %v1326, 2147483648
        %v1343 = vsel %vm1341, %v1342, %v1334
        %v1344 = vsel %vm1337, %v1340, %v1343
        %v1345 = vsel %vm1335, nan, %v1344
        %v1346 = vand.u32 2147483647, %v391
        %vm1347 = vcmp.le.f32.partialorder %v1346, 0.7853982
        %vm1348 = vcmp.lt.s32.totalorder %v391, 0
        %v1349 = vand.u32 %v391, 2139095040
        %v1350 = vshrl.u32 %v1349, 23
        %v1351 = vsub.s32 %v1350, 127
        %v1352 = vand.u32 2147483647, %v391
        %v1353 = vand.u32 %v1352, 8388607
        %v1354 = vor.u32 %v1353, 8388608
        %v1355 = vsub.s32 0, %v1354
        %v1356 = vadd.s32 %v1351, 1
        %vm1357 = vcmp.gt.s32.totalorder %v1356, 0
        %v1358 = vsel %vm1357, %v1356, 0
        %v1359 = vshrl.u32 %v1358, 5
        %v1360 = vand.u32 %v1358, 31
        %v1361 = vsub.s32 32, %v1360
        %v1362 = vshrl.u32 683565275, %v1361
        %v1363 = vshll.u32 683565275, %v1360
        %v1364 = vshrl.u32 2475754826, %v1361
        %v1365 = vor.u32 %v1363, %v1364
        %v1366 = vshll.u32 2475754826, %v1360
        %v1367 = vshrl.u32 2131351028, %v1361
        %v1368 = vor.u32 %v1366, %v1367
        %v1369 = vshll.u32 2131351028, %v1360
        %v1370 = vshrl.u32 2102212464, %v1361
        %v1371 = vor.u32 %v1369, %v1370
        %v1372 = vshll.u32 2102212464, %v1360
        %v1373 = vshrl.u32 920167782, %v1361
        %v1374 = vor.u32 %v1372, %v1373
        %v1375 = vshll.u32 920167782, %v1360
        %v1376 = vshrl.u32 1326507024, %v1361
        %v1377 = vor.u32 %v1375, %v1376
        %vm1378 = vcmp.lt.s32.totalorder %v1359, 1
        %vm1379 = vcmp.lt.s32.totalorder %v1359, 2
        %vm1380 = vcmp.lt.s32.totalorder %v1359, 3
        %vm1381 = vcmp.lt.s32.totalorder %v1359, 4
        %v1382 = vsel %vm1378, %v1362, %v1365
        %v1383 = vsel %vm1381, %v1371, 2102212464
        %v1384 = vsel %vm1380, %v1368, %v1383
        %v1385 = vsel %vm1379, %v1382, %v1384
        %v1386 = vsel %vm1378, %v1365, %v1368
        %v1387 = vsel %vm1381, %v1374, 920167782
        %v1388 = vsel %vm1380, %v1371, %v1387
        %v1389 = vsel %vm1379, %v1386, %v1388
        %v1390 = vsel %vm1378, %v1368, %v1371
        %v1391 = vsel %vm1381, %v1377, 1326507024
        %v1392 = vsel %vm1380, %v1374, %v1391
        %v1393 = vsel %vm1379, %v1390, %v1392
        %v1394 = vshll.u32 %v1354, 8
        %v1395 = vand.u32 %v1394, 65535
        %v1396 = vshrl.u32 %v1394, 16
        %v1397 = vand.u32 %v1393, 65535
        %v1398 = vshrl.u32 %v1393, 16
        %v1399 = vmul.u32 %v1395, %v1397
        %v1400 = vmul.u32 %v1395, %v1398
        %v1401 = vmul.u32 %v1396, %v1397
        %v1402 = vmul.u32 %v1396, %v1398
        %v1403 = vshll.u32 %v1400, 16
        %v1404 = vshrl.u32 %v1400, 16
        %v1405 = vshll.u32 %v1401, 16
        %v1406 = vshrl.u32 %v1401, 16
        %vm1407 = vc.u32 %v1399, %v1403
        %v1408 = vsel %vm1407, 1, 0
        %v1409 = vadd.s32 %v1399, %v1403
        %v1410 = vadd.s32 %v1402, %v1408
        %vm1411 = vc.u32 %v1409, %v1405
        %v1412 = vsel %vm1411, 1, 0
        %v1413 = vadd.s32 %v1409, %v1405
        %v1414 = vadd.s32 %v1410, %v1412
        %v1415 = vadd.s32 %v1414, %v1404
        %v1416 = vadd.s32 %v1415, %v1406
        %v1417 = vand.u32 %v1394, 65535
        %v1418 = vshrl.u32 %v1394, 16
        %v1419 = vand.u32 %v1389, 65535
        %v1420 = vshrl.u32 %v1389, 16
        %v1421 = vmul.u32 %v1417, %v1419
        %v1422 = vmul.u32 %v1417, %v1420
        %v1423 = vmul.u32 %v1418, %v1419
        %v1424 = vmul.u32 %v1418, %v1420
        %v1425 = vshll.u32 %v1422, 16
        %v1426 = vshrl.u32 %v1422, 16
        %v1427 = vshll.u32 %v1423, 16
        %v1428 = vshrl.u32 %v1423, 16
        %vm1429 = vc.u32 %v1421, %v1425
        %v1430 = vsel %vm1429, 1, 0
        %v1431 = vadd.s32 %v1421, %v1425
        %v1432 = vadd.s32 %v1424, %v1430
        %vm1433 = vc.u32 %v1431, %v1427
        %v1434 = vsel %vm1433, 1, 0
        %v1435 = vadd.s32 %v1431, %v1427
        %v1436 = vadd.s32 %v1432, %v1434
        %v1437 = vadd.s32 %v1436, %v1426
        %v1438 = vadd.s32 %v1437, %v1428
        %v1439 = vmul.u32 %v1394, %v1385
        %v1440 = vadd.s32 %v1416, %v1435
        %vm1441 = vc.u32 %v1416, %v1435
        %v1442 = vadd.s32 %v1438, 1
        %v1443 = vsel %vm1441, %v1442, %v1438
        %v1444 = vadd.s32 %v1439, %v1443
        %v1445 = vadd.s32 %v1444, 536870912
        %v1446 = vshrl.u32 %v1445, 30
        %v1447 = vshll.u32 %v1446, 30
        %v1448 = vsub.s32 %v1444, %v1447
        %vm1449 = vcmp.lt.s32.totalorder %v1448, 0
        %v1450 = vsub.s32 0, %v1448
        %v1451 = vsel %vm1449, %v1450, %v1448
        %v1452 = vclz %v1451
        %v1453 = vsub.s32 %v1452, 2
        %vm1454 = vcmp.gt.s32.totalorder 0, %v1453
        %v1455 = vsel %vm1454, 0, %v1453
        %v1456 = vsub.s32 32, %v1455
        %v1457 = vshll.u32 %v1448, %v1455
        %v1458 = vshrl.u32 %v1440, %v1456
        %v1459 = vor.u32 %v1457, %v1458
        %v1460 = vsub.s32 4294967266, %v1455
        %v1461 = vadd.s32 %v1460, 127
        %v1462 = vshll.u32 %v1461, 23
        %v1463 = vor.u32 4788187, %v1462
        %v1464 = vand.u32 2147483647, %v1463
        %v1466 = vcvt.s32.f32 %v1459
        %v1467 = vmul.f32 %v1466, %v1464
        %v1468 = vxor.u32 %v1467, 2147483648
        %v1469 = vsel %vm1348, %v1468, %v1467
        %v1470 = vsub.s32 4, %v1446
        %v1471 = vsel %vm1348, %v1470, %v1446
        %v1472 = vsel %vm1347, %v391, %v1469
        %v1473 = vsel %vm1347, 0, %v1471
        %v1474 = vmul.f32 %v1472, %v1472
        %v1475 = vmul.f32 %v1474, -0.001358992
        %v1476 = vadd.f32 %v1475, 0.041655596
        %v1477 = vmul.f32 %v1474, %v1476
        %v1478 = vadd.f32 %v1477, -0.4999988
        %v1479 = vmul.f32 %v1474, %v1478
        %v1480 = vadd.f32 1.0, %v1479
        %v1481 = vmul.f32 %v1472, %v1472
        %v1482 = vmul.f32 %v1481, -0.00019511016
        %v1483 = vadd.f32 %v1482, 0.008332121
        %v1484 = vmul.f32 %v1481, %v1483
        %v1485 = vadd.f32 %v1484, -0.16666654
        %v1486 = vmul.f32 %v1481, %v1485
        %v1487 = vadd.f32 %v1486, 1.0
        %v1488 = vmul.f32 %v1487, %v1472
        %vm1489 = vweird.f32 %v391
        %v1490 = vand.u32 %v1473, 3
        %vm1491 = vcmp.lt.s32.totalorder %v1490, 2
        %vm1492 = vcmp.eq.s32.totalorder %v1490, 0
        %v1493 = vxor.u32 %v1488, 2147483648
        %v1494 = vsel %vm1492, %v1480, %v1493
        %vm1495 = vcmp.eq.s32.totalorder %v1490, 2
        %v1496 = vxor.u32 %v1480, 2147483648
        %v1497 = vsel %vm1495, %v1496, %v1488
        %v1498 = vsel %vm1491, %v1494, %v1497
        %v1499 = vsel %vm1489, nan, %v1498
        %v1500 = vand.u32 2147483647, %v420
        %vm1501 = vcmp.le.f32.partialorder %v1500, 0.7853982
        %vm1502 = vcmp.lt.s32.totalorder %v420, 0
        %v1503 = vand.u32 %v420, 2139095040
        %v1504 = vshrl.u32 %v1503, 23
        %v1505 = vsub.s32 %v1504, 127
        %v1506 = vand.u32 2147483647, %v420
        %v1507 = vand.u32 %v1506, 8388607
        %v1508 = vor.u32 %v1507, 8388608
        %v1509 = vsub.s32 0, %v1508
        %v1510 = vadd.s32 %v1505, 1
        %vm1511 = vcmp.gt.s32.totalorder %v1510, 0
        %v1512 = vsel %vm1511, %v1510, 0
        %v1513 = vshrl.u32 %v1512, 5
        %v1514 = vand.u32 %v1512, 31
        %v1515 = vsub.s32 32, %v1514
        %v1516 = vshrl.u32 683565275, %v1515
        %v1517 = vshll.u32 683565275, %v1514
        %v1518 = vshrl.u32 2475754826, %v1515
        %v1519 = vor.u32 %v1517, %v1518
        %v1520 = vshll.u32 2475754826, %v1514
        %v1521 = vshrl.u32 2131351028, %v1515
        %v1522 = vor.u32 %v1520, %v1521
        %v1523 = vshll.u32 2131351028, %v1514
        %v1524 = vshrl.u32 2102212464, %v1515
        %v1525 = vor.u32 %v1523, %v1524
        %v1526 = vshll.u32 2102212464, %v1514
        %v1527 = vshrl.u32 920167782, %v1515
        %v1528 = vor.u32 %v1526, %v1527
        %v1529 = vshll.u32 920167782, %v1514
        %v1530 = vshrl.u32 1326507024, %v1515
        %v1531 = vor.u32 %v1529, %v1530
        %vm1532 = vcmp.lt.s32.totalorder %v1513, 1
        %vm1533 = vcmp.lt.s32.totalorder %v1513, 2
        %vm1534 = vcmp.lt.s32.totalorder %v1513, 3
        %vm1535 = vcmp.lt.s32.totalorder %v1513, 4
        %v1536 = vsel %vm1532, %v1516, %v1519
        %v1537 = vsel %vm1535, %v1525, 2102212464
        %v1538 = vsel %vm1534, %v1522, %v1537
        %v1539 = vsel %vm1533, %v1536, %v1538
        %v1540 = vsel %vm1532, %v1519, %v1522
        %v1541 = vsel %vm1535, %v1528, 920167782
        %v1542 = vsel %vm1534, %v1525, %v1541
        %v1543 = vsel %vm1533, %v1540, %v1542
        %v1544 = vsel %vm1532, %v1522, %v1525
        %v1545 = vsel %vm1535, %v1531, 1326507024
        %v1546 = vsel %vm1534, %v1528, %v1545
        %v1547 = vsel %vm1533, %v1544, %v1546
        %v1548 = vshll.u32 %v1508, 8
        %v1549 = vand.u32 %v1548, 65535
        %v1550 = vshrl.u32 %v1548, 16
        %v1551 = vand.u32 %v1547, 65535
        %v1552 = vshrl.u32 %v1547, 16
        %v1553 = vmul.u32 %v1549, %v1551
        %v1554 = vmul.u32 %v1549, %v1552
        %v1555 = vmul.u32 %v1550, %v1551
        %v1556 = vmul.u32 %v1550, %v1552
        %v1557 = vshll.u32 %v1554, 16
        %v1558 = vshrl.u32 %v1554, 16
        %v1559 = vshll.u32 %v1555, 16
        %v1560 = vshrl.u32 %v1555, 16
        %vm1561 = vc.u32 %v1553, %v1557
        %v1562 = vsel %vm1561, 1, 0
        %v1563 = vadd.s32 %v1553, %v1557
        %v1564 = vadd.s32 %v1556, %v1562
        %vm1565 = vc.u32 %v1563, %v1559
        %v1566 = vsel %vm1565, 1, 0
        %v1567 = vadd.s32 %v1563, %v1559
        %v1568 = vadd.s32 %v1564, %v1566
        %v1569 = vadd.s32 %v1568, %v1558
        %v1570 = vadd.s32 %v1569, %v1560
        %v1571 = vand.u32 %v1548, 65535
        %v1572 = vshrl.u32 %v1548, 16
        %v1573 = vand.u32 %v1543, 65535
        %v1574 = vshrl.u32 %v1543, 16
        %v1575 = vmul.u32 %v1571, %v1573
        %v1576 = vmul.u32 %v1571, %v1574
        %v1577 = vmul.u32 %v1572, %v1573
        %v1578 = vmul.u32 %v1572, %v1574
        %v1579 = vshll.u32 %v1576, 16
        %v1580 = vshrl.u32 %v1576, 16
        %v1581 = vshll.u32 %v1577, 16
        %v1582 = vshrl.u32 %v1577, 16
        %vm1583 = vc.u32 %v1575, %v1579
        %v1584 = vsel %vm1583, 1, 0
        %v1585 = vadd.s32 %v1575, %v1579
        %v1586 = vadd.s32 %v1578, %v1584
        %vm1587 = vc.u32 %v1585, %v1581
        %v1588 = vsel %vm1587, 1, 0
        %v1589 = vadd.s32 %v1585, %v1581
        %v1590 = vadd.s32 %v1586, %v1588
        %v1591 = vadd.s32 %v1590, %v1580
        %v1592 = vadd.s32 %v1591, %v1582
        %v1593 = vmul.u32 %v1548, %v1539
        %v1594 = vadd.s32 %v1570, %v1589
        %vm1595 = vc.u32 %v1570, %v1589
        %v1596 = vadd.s32 %v1592, 1
        %v1597 = vsel %vm1595, %v1596, %v1592
        %v1598 = vadd.s32 %v1593, %v1597
        %v1599 = vadd.s32 %v1598, 536870912
        %v1600 = vshrl.u32 %v1599, 30
        %v1601 = vshll.u32 %v1600, 30
        %v1602 = vsub.s32 %v1598, %v1601
        %vm1603 = vcmp.lt.s32.totalorder %v1602, 0
        %v1604 = vsub.s32 0, %v1602
        %v1605 = vsel %vm1603, %v1604, %v1602
        %v1606 = vclz %v1605
        %v1607 = vsub.s32 %v1606, 2
        %vm1608 = vcmp.gt.s32.totalorder 0, %v1607
        %v1609 = vsel %vm1608, 0, %v1607
        %v1610 = vsub.s32 32, %v1609
        %v1611 = vshll.u32 %v1602, %v1609
        %v1612 = vshrl.u32 %v1594, %v1610
        %v1613 = vor.u32 %v1611, %v1612
        %v1614 = vsub.s32 4294967266, %v1609
        %v1615 = vadd.s32 %v1614, 127
        %v1616 = vshll.u32 %v1615, 23
        %v1617 = vor.u32 4788187, %v1616
        %v1618 = vand.u32 2147483647, %v1617
        %v1620 = vcvt.s32.f32 %v1613
        %v1621 = vmul.f32 %v1620, %v1618
        %v1622 = vxor.u32 %v1621, 2147483648
        %v1623 = vsel %vm1502, %v1622, %v1621
        %v1624 = vsub.s32 4, %v1600
        %v1625 = vsel %vm1502, %v1624, %v1600
        %v1626 = vsel %vm1501, %v420, %v1623
        %v1627 = vsel %vm1501, 0, %v1625
        %v1628 = vmul.f32 %v1626, %v1626
        %v1629 = vmul.f32 %v1628, -0.001358992
        %v1630 = vadd.f32 %v1629, 0.041655596
        %v1631 = vmul.f32 %v1628, %v1630
        %v1632 = vadd.f32 %v1631, -0.4999988
        %v1633 = vmul.f32 %v1628, %v1632
        %v1634 = vadd.f32 1.0, %v1633
        %v1635 = vmul.f32 %v1626, %v1626
        %v1636 = vmul.f32 %v1635, -0.00019511016
        %v1637 = vadd.f32 %v1636, 0.008332121
        %v1638 = vmul.f32 %v1635, %v1637
        %v1639 = vadd.f32 %v1638, -0.16666654
        %v1640 = vmul.f32 %v1635, %v1639
        %v1641 = vadd.f32 %v1640, 1.0
        %v1642 = vmul.f32 %v1641, %v1626
        %vm1643 = vweird.f32 %v420
        %v1644 = vand.u32 %v1627, 3
        %vm1645 = vcmp.lt.s32.totalorder %v1644, 2
        %vm1646 = vcmp.eq.s32.totalorder %v1644, 0
        %v1647 = vxor.u32 %v1642, 2147483648
        %v1648 = vsel %vm1646, %v1634, %v1647
        %vm1649 = vcmp.eq.s32.totalorder %v1644, 2
        %v1650 = vxor.u32 %v1634, 2147483648
        %v1651 = vsel %vm1649, %v1650, %v1642
        %v1652 = vsel %vm1645, %v1648, %v1651
        %v1653 = vsel %vm1643, nan, %v1652
        %v1654 = vadd.f32 %v575, %v883
        %v1655 = vadd.f32 %v1654, %v1191
        %v1656 = vadd.f32 %v1655, %v1499
        %v1657 = vrot.slane %v1656, 4
        %v1658 = vadd.f32 %v1656, %v1657
        %v1659 = vrot.slane %v1658, 2
        %v1660 = vadd.f32 %v1658, %v1659
        %v1661 = vrot.slane %v1660, 1
        %v1662 = vadd.f32 %v1660, %v1661
        %v1663 = vadd.f32 %v729, %v1037
        %v1664 = vadd.f32 %v1663, %v1345
        %v1665 = vadd.f32 %v1664, %v1653
        %v1666 = vrot.slane %v1665, 4
        %v1667 = vadd.f32 %v1665, %v1666
        %v1668 = vrot.slane %v1667, 2
        %v1669 = vadd.f32 %v1667, %v1668
        %v1670 = vrot.slane %v1669, 1
        %v1671 = vadd.f32 %v1669, %v1670
        %v1672 = vadd.f32 %v305, %v307
        %v1673 = vrot.slane %v1672, 4
        %v1674 = vadd.f32 %v1672, %v1673
        %v1675 = vrot.slane %v1674, 2
        %v1676 = vadd.f32 %v1674, %v1675
        %v1677 = vrot.slane %v1676, 1
        %v1678 = vadd.f32 %v1676, %v1677
        %v1679 = vadd.f32 %v306, %v308
        %v1680 = vrot.slane %v1679, 4
        %v1681 = vadd.f32 %v1679, %v1680
        %v1682 = vrot.slane %v1681, 2
        %v1683 = vadd.f32 %v1681, %v1682
        %v1684 = vrot.slane %v1683, 1
        %v1685 = vadd.f32 %v1683, %v1684
        %v1686 = vadd.f32 %v1662, %v1678
        %v1687 = vadd.f32 %v1671, %v1685
        %v1688 = vmul.f32 %v1686, 0.020833334
        %v1689 = vmul.f32 %v1687, 0.020833334
        %v1690 = vsub.f32 %v575, %v1688
        %v1691 = vsub.f32 %v729, %v1689
        %v1692 = vsub.f32 %v883, %v1688
        %v1693 = vsub.f32 %v1037, %v1689
        %v1694 = vsub.f32 %v1191, %v1688
        %v1695 = vsub.f32 %v1345, %v1689
        %v1696 = vsub.f32 %v1499, %v1688
        %v1697 = vsub.f32 %v1653, %v1689
        %v1698 = vsub.f32 %v305, %v1688
        %v1699 = vsub.f32 %v306, %v1689
        %v1700 = vsub.f32 %v307, %v1688
        %v1701 = vsub.f32 %v308, %v1689
        %v1702 = vmul.f32 %v1690, %v1690
        %v1703 = vmul.f32 %v1691, %v1691
        %v1704 = vmul.f32 %v1692, %v1692
        %v1705 = vmul.f32 %v1693, %v1693
        %v1706 = vmul.f32 %v1694, %v1694
        %v1707 = vmul.f32 %v1695, %v1695
        %v1708 = vmul.f32 %v1696, %v1696
        %v1709 = vmul.f32 %v1697, %v1697
        %v1710 = vadd.f32 %v1702, %v1704
        %v1711 = vadd.f32 %v1710, %v1706
        %v1712 = vadd.f32 %v1711, %v1708
        %v1713 = vrot.slane %v1712, 4
        %v1714 = vadd.f32 %v1712, %v1713
        %v1715 = vrot.slane %v1714, 2
        %v1716 = vadd.f32 %v1714, %v1715
        %v1717 = vrot.slane %v1716, 1
        %v1718 = vadd.f32 %v1716, %v1717
        %v1719 = vadd.f32 %v1703, %v1705
        %v1720 = vadd.f32 %v1719, %v1707
        %v1721 = vadd.f32 %v1720, %v1709
        %v1722 = vrot.slane %v1721, 4
        %v1723 = vadd.f32 %v1721, %v1722
        %v1724 = vrot.slane %v1723, 2
        %v1725 = vadd.f32 %v1723, %v1724
        %v1726 = vrot.slane %v1725, 1
        %v1727 = vadd.f32 %v1725, %v1726
        %v1728 = vmul.f32 %v1698, %v1698
        %v1729 = vmul.f32 %v1699, %v1699
        %v1730 = vmul.f32 %v1700, %v1700
        %v1731 = vmul.f32 %v1701, %v1701
        %v1732 = vadd.f32 %v1728, %v1730
        %v1733 = vrot.slane %v1732, 4
        %v1734 = vadd.f32 %v1732, %v1733
        %v1735 = vrot.slane %v1734, 2
        %v1736 = vadd.f32 %v1734, %v1735
        %v1737 = vrot.slane %v1736, 1
        %v1738 = vadd.f32 %v1736, %v1737
        %v1739 = vadd.f32 %v1729, %v1731
        %v1740 = vrot.slane %v1739, 4
        %v1741 = vadd.f32 %v1739, %v1740
        %v1742 = vrot.slane %v1741, 2
        %v1743 = vadd.f32 %v1741, %v1742
        %v1744 = vrot.slane %v1743, 1
        %v1745 = vadd.f32 %v1743, %v1744
        %v1746 = vadd.f32 %v1718, %v1738
        %v1747 = vadd.f32 %v1727, %v1745
        %v1748 = vmul.f32 %v1746, 0.020833334
        %v1749 = vmul.f32 %v1747, 0.020833334
        %v1750 = vadd.f32 %v1748, 1e-05
        %v1751 = vadd.f32 %v1749, 1e-05
        %v1752 = vrsqrt.pop %v1750
        %v1753 = vmul.f32 %v1752, %v1750
        %v1754 = vmul.f32 %v1753, %v1752
        %v1755 = vmul.f32 0.5, %v1754
        %v1756 = vsub.f32 1.5, %v1755
        %v1757 = vmul.f32 %v1752, %v1756
        %vm1758 = vweird.f32 %v1750
        %vm1759 = vweird.f32 %v1752
        %vm1760 = vmor %vm1758, %vm1759
        %v1761 = vsel %vm1760, %v1752, %v1757
        %v1762 = vrsqrt.pop %v1751
        %v1763 = vmul.f32 %v1762, %v1751
        %v1764 = vmul.f32 %v1763, %v1762
        %v1765 = vmul.f32 0.5, %v1764
        %v1766 = vsub.f32 1.5, %v1765
        %v1767 = vmul.f32 %v1762, %v1766
        %vm1768 = vweird.f32 %v1751
        %vm1769 = vweird.f32 %v1762
        %vm1770 = vmor %vm1768, %vm1769
        %v1771 = vsel %vm1770, %v1762, %v1767
        %v1772 = vmul.f32 %v1690, %v1761
        %v1773 = vmul.f32 %v1691, %v1771
        %v1774 = vmul.f32 %v1692, %v1761
        %v1775 = vmul.f32 %v1693, %v1771
        %v1776 = vmul.f32 %v1694, %v1761
        %v1777 = vmul.f32 %v1695, %v1771
        %v1778 = vmul.f32 %v1696, %v1761
        %v1779 = vmul.f32 %v1697, %v1771
        %v1780 = vmul.f32 %v1698, %v1761
        %v1781 = vmul.f32 %v1699, %v1771
        %v1782 = vmul.f32 %v1700, %v1761
        %v1783 = vmul.f32 %v1701, %v1771
        %v1784 = vld [vmem:[%s2] sm:$0xff]
        %v1785 = vld [vmem:[%s2 + $0x8] sm:$0xff]
        %v1786 = vld [vmem:[%s2 + $0x10] sm:$0xff]
        %v1787 = vld [vmem:[%s2 + $0x18] sm:$0xff]
        %v1788 = vld [vmem:[%s2 + $0x20] sm:$0xff]
        %v1789 = vld [vmem:[%s2 + $0x28] sm:$0xff]
        %v1790 = vld [vmem:[%s2 + $0x30] sm:$0xff]
        %v1791 = vld [vmem:[%s2 + $0x38] sm:$0xff]
        %v1792 = vld [vmem:[%s3] sm:$0xff]
        %v1793 = vld [vmem:[%s3 + $0x8] sm:$0xff]
        %v1794 = vld [vmem:[%s3 + $0x10] sm:$0xff]
        %v1795 = vld [vmem:[%s3 + $0x18] sm:$0xff]
        %v1796 = vld [vmem:[%s3 + $0x20] sm:$0xff]
        %v1797 = vld [vmem:[%s3 + $0x28] sm:$0xff]
        %v1798 = vld [vmem:[%s3 + $0x30] sm:$0xff]
        %v1799 = vld [vmem:[%s3 + $0x38] sm:$0xff]
        %v1801 = vsel %vm351, %v1792, 0
        %v1804 = vsel %vm351, %v1793, 0
        %v1807 = vsel %vm351, %v1794, 0
        %v1810 = vsel %vm351, %v1795, 0
        %v1813 = vsel %vm351, %v1796, 0
        %v1816 = vsel %vm351, %v1797, 0
        %v1819 = vsel %vm351, %v1798, 0
        %v1822 = vsel %vm351, %v1799, 0
        %1824 = vmatpush.msra.mxu0 0.0
        %1825 = vmatpush.msra.mxu0 0.0
        %1826 = vmatpush.msra.mxu0 0.0
        %1827 = vmatpush.msra.mxu0 0.0
        %1828 = vmatpush.msra.mxu0 0.0
        %1829 = vmatpush.msra.mxu0 0.0
        %1830 = vmatpush.msra.mxu0 0.0
        %1831 = vmatpush.msra.mxu0 0.0
        %1832 = vmatpush.msra.mxu0 0.0
        %1833 = vmatpush.msra.mxu0 0.0
        %1834 = vmatpush.msra.mxu0 0.0
        %1835 = vmatpush.msra.mxu0 0.0
        %1836 = vmatpush.msra.mxu0 0.0
        %1837 = vmatpush.msra.mxu0 0.0
        %1838 = vmatpush.msra.mxu0 %v1782
        %1839 = vmatpush.msra.mxu0 %v1780
        %1840 = vmatmul.f32.gmra.mxu0 %v1801
        %v1841 = vpop.f32.mrf.mxu0
        %v1842 = vadd.f32 0.0, %v1841
        %1843 = vmatmul.f32.gmra.mxu0 %v1804
        %v1844 = vpop.f32.mrf.mxu0
        %v1845 = vadd.f32 0.0, %v1844
        %1846 = vmatmul.f32.gmra.mxu0 %v1807
        %v1847 = vpop.f32.mrf.mxu0
        %v1848 = vadd.f32 0.0, %v1847
        %1849 = vmatmul.f32.gmra.mxu0 %v1810
        %v1850 = vpop.f32.mrf.mxu0
        %v1851 = vadd.f32 0.0, %v1850
        %1852 = vmatmul.f32.gmra.mxu0 %v1813
        %v1853 = vpop.f32.mrf.mxu0
        %v1854 = vadd.f32 0.0, %v1853
        %1855 = vmatmul.f32.gmra.mxu0 %v1816
        %v1856 = vpop.f32.mrf.mxu0
        %v1857 = vadd.f32 0.0, %v1856
        %1858 = vmatmul.f32.gmra.mxu0 %v1819
        %v1859 = vpop.f32.mrf.mxu0
        %v1860 = vadd.f32 0.0, %v1859
        %1861 = vmatmul.f32.gmra.mxu0 %v1822
        %v1862 = vpop.f32.mrf.mxu0
        %v1863 = vadd.f32 0.0, %v1862
        %1864 = vdwg.mxu0
        %1865 = vmatpush.msra.mxu0 0.0
        %1866 = vmatpush.msra.mxu0 0.0
        %1867 = vmatpush.msra.mxu0 0.0
        %1868 = vmatpush.msra.mxu0 0.0
        %1869 = vmatpush.msra.mxu0 0.0
        %1870 = vmatpush.msra.mxu0 0.0
        %1871 = vmatpush.msra.mxu0 0.0
        %1872 = vmatpush.msra.mxu0 0.0
        %1873 = vmatpush.msra.mxu0 0.0
        %1874 = vmatpush.msra.mxu0 0.0
        %1875 = vmatpush.msra.mxu0 0.0
        %1876 = vmatpush.msra.mxu0 0.0
        %1877 = vmatpush.msra.mxu0 0.0
        %1878 = vmatpush.msra.mxu0 0.0
        %1879 = vmatpush.msra.mxu0 %v1783
        %1880 = vmatpush.msra.mxu0 %v1781
        %1881 = vmatmul.f32.gmra.mxu0 %v1801
        %v1882 = vpop.f32.mrf.mxu0
        %v1883 = vadd.f32 0.0, %v1882
        %1884 = vmatmul.f32.gmra.mxu0 %v1804
        %v1885 = vpop.f32.mrf.mxu0
        %v1886 = vadd.f32 0.0, %v1885
        %1887 = vmatmul.f32.gmra.mxu0 %v1807
        %v1888 = vpop.f32.mrf.mxu0
        %v1889 = vadd.f32 0.0, %v1888
        %1890 = vmatmul.f32.gmra.mxu0 %v1810
        %v1891 = vpop.f32.mrf.mxu0
        %v1892 = vadd.f32 0.0, %v1891
        %1893 = vmatmul.f32.gmra.mxu0 %v1813
        %v1894 = vpop.f32.mrf.mxu0
        %v1895 = vadd.f32 0.0, %v1894
        %1896 = vmatmul.f32.gmra.mxu0 %v1816
        %v1897 = vpop.f32.mrf.mxu0
        %v1898 = vadd.f32 0.0, %v1897
        %1899 = vmatmul.f32.gmra.mxu0 %v1819
        %v1900 = vpop.f32.mrf.mxu0
        %v1901 = vadd.f32 0.0, %v1900
        %1902 = vmatmul.f32.gmra.mxu0 %v1822
        %v1903 = vpop.f32.mrf.mxu0
        %v1904 = vadd.f32 0.0, %v1903
        %1905 = vdwg.mxu0
        %vm1906 = vcmask 261120
        %v1908 = vsel %vm1906, %v1784, 0
        %v1911 = vsel %vm1906, %v1785, 0
        %v1914 = vsel %vm1906, %v1786, 0
        %v1917 = vsel %vm1906, %v1787, 0
        %v1920 = vsel %vm1906, %v1788, 0
        %v1923 = vsel %vm1906, %v1789, 0
        %v1926 = vsel %vm1906, %v1790, 0
        %v1929 = vsel %vm1906, %v1791, 0
        %1931 = vmatpush.msra.mxu0 0.0
        %1932 = vmatpush.msra.mxu0 0.0
        %1933 = vmatpush.msra.mxu0 0.0
        %1934 = vmatpush.msra.mxu0 0.0
        %1935 = vmatpush.msra.mxu0 0.0
        %1936 = vmatpush.msra.mxu0 0.0
        %1937 = vmatpush.msra.mxu0 0.0
        %1938 = vmatpush.msra.mxu0 0.0
        %1939 = vmatpush.msra.mxu0 0.0
        %1940 = vmatpush.msra.mxu0 0.0
        %1941 = vmatpush.msra.mxu0 0.0
        %1942 = vmatpush.msra.mxu0 0.0
        %1943 = vmatpush.msra.mxu0 %v1778
        %1944 = vmatpush.msra.mxu0 %v1776
        %1945 = vmatpush.msra.mxu0 %v1774
        %1946 = vmatpush.msra.mxu0 %v1772
        %1947 = vmatmul.f32.gmra.mxu0 %v1908
        %v1948 = vpop.f32.mrf.mxu0
        %v1949 = vadd.f32 %v1842, %v1948
        %1950 = vmatmul.f32.gmra.mxu0 %v1911
        %v1951 = vpop.f32.mrf.mxu0
        %v1952 = vadd.f32 %v1845, %v1951
        %1953 = vmatmul.f32.gmra.mxu0 %v1914
        %v1954 = vpop.f32.mrf.mxu0
        %v1955 = vadd.f32 %v1848, %v1954
        %1956 = vmatmul.f32.gmra.mxu0 %v1917
        %v1957 = vpop.f32.mrf.mxu0
        %v1958 = vadd.f32 %v1851, %v1957
        %1959 = vmatmul.f32.gmra.mxu0 %v1920
        %v1960 = vpop.f32.mrf.mxu0
        %v1961 = vadd.f32 %v1854, %v1960
        %1962 = vmatmul.f32.gmra.mxu0 %v1923
        %v1963 = vpop.f32.mrf.mxu0
        %v1964 = vadd.f32 %v1857, %v1963
        %1965 = vmatmul.f32.gmra.mxu0 %v1926
        %v1966 = vpop.f32.mrf.mxu0
        %v1967 = vadd.f32 %v1860, %v1966
        %1968 = vmatmul.f32.gmra.mxu0 %v1929
        %v1969 = vpop.f32.mrf.mxu0
        %v1970 = vadd.f32 %v1863, %v1969
        %1971 = vdwg.mxu0
        %1972 = vmatpush.msra.mxu0 0.0
        %1973 = vmatpush.msra.mxu0 0.0
        %1974 = vmatpush.msra.mxu0 0.0
        %1975 = vmatpush.msra.mxu0 0.0
        %1976 = vmatpush.msra.mxu0 0.0
        %1977 = vmatpush.msra.mxu0 0.0
        %1978 = vmatpush.msra.mxu0 0.0
        %1979 = vmatpush.msra.mxu0 0.0
        %1980 = vmatpush.msra.mxu0 0.0
        %1981 = vmatpush.msra.mxu0 0.0
        %1982 = vmatpush.msra.mxu0 0.0
        %1983 = vmatpush.msra.mxu0 0.0
        %1984 = vmatpush.msra.mxu0 %v1779
        %1985 = vmatpush.msra.mxu0 %v1777
        %1986 = vmatpush.msra.mxu0 %v1775
        %1987 = vmatpush.msra.mxu0 %v1773
        %1988 = vmatmul.f32.gmra.mxu0 %v1908
        %v1989 = vpop.f32.mrf.mxu0
        %v1990 = vadd.f32 %v1883, %v1989
        %1991 = vmatmul.f32.gmra.mxu0 %v1911
        %v1992 = vpop.f32.mrf.mxu0
        %v1993 = vadd.f32 %v1886, %v1992
        %1994 = vmatmul.f32.gmra.mxu0 %v1914
        %v1995 = vpop.f32.mrf.mxu0
        %v1996 = vadd.f32 %v1889, %v1995
        %1997 = vmatmul.f32.gmra.mxu0 %v1917
        %v1998 = vpop.f32.mrf.mxu0
        %v1999 = vadd.f32 %v1892, %v1998
        %2000 = vmatmul.f32.gmra.mxu0 %v1920
        %v2001 = vpop.f32.mrf.mxu0
        %v2002 = vadd.f32 %v1895, %v2001
        %2003 = vmatmul.f32.gmra.mxu0 %v1923
        %v2004 = vpop.f32.mrf.mxu0
        %v2005 = vadd.f32 %v1898, %v2004
        %2006 = vmatmul.f32.gmra.mxu0 %v1926
        %v2007 = vpop.f32.mrf.mxu0
        %v2008 = vadd.f32 %v1901, %v2007
        %2009 = vmatmul.f32.gmra.mxu0 %v1929
        %v2010 = vpop.f32.mrf.mxu0
        %v2011 = vadd.f32 %v1904, %v2010
        %2012 = vdwg.mxu0
        %2014 = vset.pattern.permute.xlu0 0
        %2015 = vperm.xlu0 %2014, %v313
        %v2016 = vpop.permute.xlu0 %2015
        %2019 = vset.pattern.permute.xlu0 0
        %2020 = vperm.xlu0 %2019, %v314
        %v2021 = vpop.permute.xlu0 %2020
        %2024 = vset.pattern.permute.xlu0 0
        %2025 = vperm.xlu0 %2024, %v315
        %v2026 = vpop.permute.xlu0 %2025
        %2029 = vset.pattern.permute.xlu0 0
        %2030 = vperm.xlu0 %2029, %v316
        %v2031 = vpop.permute.xlu0 %2030
        %2034 = vset.pattern.permute.xlu0 0
        %2035 = vperm.xlu0 %2034, %v317
        %v2036 = vpop.permute.xlu0 %2035
        %2039 = vset.pattern.permute.xlu0 0
        %2040 = vperm.xlu0 %2039, %v318
        %v2041 = vpop.permute.xlu0 %2040
        %2044 = vset.pattern.permute.xlu0 0
        %2045 = vperm.xlu0 %2044, %v319
        %v2046 = vpop.permute.xlu0 %2045
        %2049 = vset.pattern.permute.xlu0 0
        %2050 = vperm.xlu0 %2049, %v320
        %v2051 = vpop.permute.xlu0 %2050
        %v2053 = vadd.f32 %v1949, %v2016
        %v2054 = vadd.f32 %v1990, %v2016
        %v2055 = vadd.f32 %v1952, %v2021
        %v2056 = vadd.f32 %v1993, %v2021
        %v2057 = vadd.f32 %v1955, %v2026
        %v2058 = vadd.f32 %v1996, %v2026
        %v2059 = vadd.f32 %v1958, %v2031
        %v2060 = vadd.f32 %v1999, %v2031
        %v2061 = vadd.f32 %v1961, %v2036
        %v2062 = vadd.f32 %v2002, %v2036
        %v2063 = vadd.f32 %v1964, %v2041
        %v2064 = vadd.f32 %v2005, %v2041
        %v2065 = vadd.f32 %v1967, %v2046
        %v2066 = vadd.f32 %v2008, %v2046
        %v2067 = vadd.f32 %v1970, %v2051
        %v2068 = vadd.f32 %v2011, %v2051
        %vm2069 = vcmp.gt.f32.partialorder %v2053, 0.0
        %vm2070 = vcmp.gt.f32.partialorder %v2054, 0.0
        %vm2071 = vcmp.gt.f32.partialorder %v2055, 0.0
        %vm2072 = vcmp.gt.f32.partialorder %v2056, 0.0
        %vm2073 = vcmp.gt.f32.partialorder %v2057, 0.0
        %vm2074 = vcmp.gt.f32.partialorder %v2058, 0.0
        %vm2075 = vcmp.gt.f32.partialorder %v2059, 0.0
        %vm2076 = vcmp.gt.f32.partialorder %v2060, 0.0
        %vm2077 = vcmp.gt.f32.partialorder %v2061, 0.0
        %vm2078 = vcmp.gt.f32.partialorder %v2062, 0.0
        %vm2079 = vcmp.gt.f32.partialorder %v2063, 0.0
        %vm2080 = vcmp.gt.f32.partialorder %v2064, 0.0
        %vm2081 = vcmp.gt.f32.partialorder %v2065, 0.0
        %vm2082 = vcmp.gt.f32.partialorder %v2066, 0.0
        %vm2083 = vcmp.gt.f32.partialorder %v2067, 0.0
        %vm2084 = vcmp.gt.f32.partialorder %v2068, 0.0
        %v2085 = vmul.f32 %v2053, 0.2
        %v2086 = vmul.f32 %v2054, 0.2
        %v2087 = vmul.f32 %v2055, 0.2
        %v2088 = vmul.f32 %v2056, 0.2
        %v2089 = vmul.f32 %v2057, 0.2
        %v2090 = vmul.f32 %v2058, 0.2
        %v2091 = vmul.f32 %v2059, 0.2
        %v2092 = vmul.f32 %v2060, 0.2
        %v2093 = vmul.f32 %v2061, 0.2
        %v2094 = vmul.f32 %v2062, 0.2
        %v2095 = vmul.f32 %v2063, 0.2
        %v2096 = vmul.f32 %v2064, 0.2
        %v2097 = vmul.f32 %v2065, 0.2
        %v2098 = vmul.f32 %v2066, 0.2
        %v2099 = vmul.f32 %v2067, 0.2
        %v2100 = vmul.f32 %v2068, 0.2
        %v2101 = vsel %vm2069, %v2053, %v2085
        %v2102 = vsel %vm2070, %v2054, %v2086
        %v2103 = vsel %vm2071, %v2055, %v2087
        %v2104 = vsel %vm2072, %v2056, %v2088
        %v2105 = vsel %vm2073, %v2057, %v2089
        %v2106 = vsel %vm2074, %v2058, %v2090
        %v2107 = vsel %vm2075, %v2059, %v2091
        %v2108 = vsel %vm2076, %v2060, %v2092
        %v2109 = vsel %vm2077, %v2061, %v2093
        %v2110 = vsel %vm2078, %v2062, %v2094
        %v2111 = vsel %vm2079, %v2063, %v2095
        %v2112 = vsel %vm2080, %v2064, %v2096
        %v2113 = vsel %vm2081, %v2065, %v2097
        %v2114 = vsel %vm2082, %v2066, %v2098
        %v2115 = vsel %vm2083, %v2067, %v2099
        %v2116 = vsel %vm2084, %v2068, %v2100
        %v2117 = vld [vmem:[%s4] sm:$0xff]
        %v2118 = vld [vmem:[%s4 + $0x8] sm:$0xff]
        %v2119 = vld [vmem:[%s4 + $0x10] sm:$0xff]
        %v2120 = vld [vmem:[%s4 + $0x18] sm:$0xff]
        %2122 = vset.pattern.permute.xlu0 0
        %2123 = vperm.xlu0 %2122, %v321
        %v2124 = vpop.permute.xlu0 %2123
        %2127 = vset.pattern.permute.xlu0 0
        %2128 = vperm.xlu0 %2127, %v322
        %v2129 = vpop.permute.xlu0 %2128
        %2132 = vset.pattern.permute.xlu0 0
        %2133 = vperm.xlu0 %2132, %v323
        %v2134 = vpop.permute.xlu0 %2133
        %2137 = vset.pattern.permute.xlu0 0
        %2138 = vperm.xlu0 %2137, %v324
        %v2139 = vpop.permute.xlu0 %2138
        %vm2141 = vcmask 523264
        %v2143 = vsel %vm2141, %v2117, 0
        %v2146 = vsel %vm2141, %v2118, 0
        %v2149 = vsel %vm2141, %v2119, 0
        %v2152 = vsel %vm2141, %v2120, 0
        %2154 = vmatpush.msra.mxu0 0.0
        %2155 = vmatpush.msra.mxu0 0.0
        %2156 = vmatpush.msra.mxu0 0.0
        %2157 = vmatpush.msra.mxu0 0.0
        %2158 = vmatpush.msra.mxu0 0.0
        %2159 = vmatpush.msra.mxu0 0.0
        %2160 = vmatpush.msra.mxu0 0.0
        %2161 = vmatpush.msra.mxu0 0.0
        %2162 = vmatpush.msra.mxu0 %v2115
        %2163 = vmatpush.msra.mxu0 %v2113
        %2164 = vmatpush.msra.mxu0 %v2111
        %2165 = vmatpush.msra.mxu0 %v2109
        %2166 = vmatpush.msra.mxu0 %v2107
        %2167 = vmatpush.msra.mxu0 %v2105
        %2168 = vmatpush.msra.mxu0 %v2103
        %2169 = vmatpush.msra.mxu0 %v2101
        %2170 = vmatmul.f32.gmra.mxu0 %v2143
        %v2171 = vpop.f32.mrf.mxu0
        %v2172 = vadd.f32 %v2124, %v2171
        %2173 = vmatmul.f32.gmra.mxu0 %v2146
        %v2174 = vpop.f32.mrf.mxu0
        %v2175 = vadd.f32 %v2129, %v2174
        %2176 = vmatmul.f32.gmra.mxu0 %v2149
        %v2177 = vpop.f32.mrf.mxu0
        %v2178 = vadd.f32 %v2134, %v2177
        %2179 = vmatmul.f32.gmra.mxu0 %v2152
        %v2180 = vpop.f32.mrf.mxu0
        %v2181 = vadd.f32 %v2139, %v2180
        %2182 = vdwg.mxu0
        %2183 = vmatpush.msra.mxu0 0.0
        %2184 = vmatpush.msra.mxu0 0.0
        %2185 = vmatpush.msra.mxu0 0.0
        %2186 = vmatpush.msra.mxu0 0.0
        %2187 = vmatpush.msra.mxu0 0.0
        %2188 = vmatpush.msra.mxu0 0.0
        %2189 = vmatpush.msra.mxu0 0.0
        %2190 = vmatpush.msra.mxu0 0.0
        %2191 = vmatpush.msra.mxu0 %v2116
        %2192 = vmatpush.msra.mxu0 %v2114
        %2193 = vmatpush.msra.mxu0 %v2112
        %2194 = vmatpush.msra.mxu0 %v2110
        %2195 = vmatpush.msra.mxu0 %v2108
        %2196 = vmatpush.msra.mxu0 %v2106
        %2197 = vmatpush.msra.mxu0 %v2104
        %2198 = vmatpush.msra.mxu0 %v2102
        %2199 = vmatmul.f32.gmra.mxu0 %v2143
        %v2200 = vpop.f32.mrf.mxu0
        %v2201 = vadd.f32 %v2124, %v2200
        %2202 = vmatmul.f32.gmra.mxu0 %v2146
        %v2203 = vpop.f32.mrf.mxu0
        %v2204 = vadd.f32 %v2129, %v2203
        %2205 = vmatmul.f32.gmra.mxu0 %v2149
        %v2206 = vpop.f32.mrf.mxu0
        %v2207 = vadd.f32 %v2134, %v2206
        %2208 = vmatmul.f32.gmra.mxu0 %v2152
        %v2209 = vpop.f32.mrf.mxu0
        %v2210 = vadd.f32 %v2139, %v2209
        %2211 = vdwg.mxu0
        %vm2212 = vcmp.gt.f32.partialorder %v2172, 0.0
        %vm2213 = vcmp.gt.f32.partialorder %v2201, 0.0
        %vm2214 = vcmp.gt.f32.partialorder %v2175, 0.0
        %vm2215 = vcmp.gt.f32.partialorder %v2204, 0.0
        %vm2216 = vcmp.gt.f32.partialorder %v2178, 0.0
        %vm2217 = vcmp.gt.f32.partialorder %v2207, 0.0
        %vm2218 = vcmp.gt.f32.partialorder %v2181, 0.0
        %vm2219 = vcmp.gt.f32.partialorder %v2210, 0.0
        %v2220 = vmul.f32 %v2172, 0.2
        %v2221 = vmul.f32 %v2201, 0.2
        %v2222 = vmul.f32 %v2175, 0.2
        %v2223 = vmul.f32 %v2204, 0.2
        %v2224 = vmul.f32 %v2178, 0.2
        %v2225 = vmul.f32 %v2207, 0.2
        %v2226 = vmul.f32 %v2181, 0.2
        %v2227 = vmul.f32 %v2210, 0.2
        %v2228 = vsel %vm2212, %v2172, %v2220
        %v2229 = vsel %vm2213, %v2201, %v2221
        %v2230 = vsel %vm2214, %v2175, %v2222
        %v2231 = vsel %vm2215, %v2204, %v2223
        %v2232 = vsel %vm2216, %v2178, %v2224
        %v2233 = vsel %vm2217, %v2207, %v2225
        %v2234 = vsel %vm2218, %v2181, %v2226
        %v2235 = vsel %vm2219, %v2210, %v2227
        %v2236 = vld [vmem:[%s5] sm:$0xff]
        %v2237 = vld [vmem:[%s5 + $0x8] sm:$0xff]
        %2239 = vset.pattern.permute.xlu0 0
        %2240 = vperm.xlu0 %2239, %v325
        %v2241 = vpop.permute.xlu0 %2240
        %2244 = vset.pattern.permute.xlu0 0
        %2245 = vperm.xlu0 %2244, %v326
        %v2246 = vpop.permute.xlu0 %2245
        %v2249 = vsel %vm1906, %v2236, 0
        %v2252 = vsel %vm1906, %v2237, 0
        %2254 = vmatpush.msra.mxu0 0.0
        %2255 = vmatpush.msra.mxu0 0.0
        %2256 = vmatpush.msra.mxu0 0.0
        %2257 = vmatpush.msra.mxu0 0.0
        %2258 = vmatpush.msra.mxu0 0.0
        %2259 = vmatpush.msra.mxu0 0.0
        %2260 = vmatpush.msra.mxu0 0.0
        %2261 = vmatpush.msra.mxu0 0.0
        %2262 = vmatpush.msra.mxu0 0.0
        %2263 = vmatpush.msra.mxu0 0.0
        %2264 = vmatpush.msra.mxu0 0.0
        %2265 = vmatpush.msra.mxu0 0.0
        %2266 = vmatpush.msra.mxu0 %v2234
        %2267 = vmatpush.msra.mxu0 %v2232
        %2268 = vmatpush.msra.mxu0 %v2230
        %2269 = vmatpush.msra.mxu0 %v2228
        %2270 = vmatmul.f32.gmra.mxu0 %v2249
        %v2271 = vpop.f32.mrf.mxu0
        %v2272 = vadd.f32 %v2241, %v2271
        %2273 = vmatmul.f32.gmra.mxu0 %v2252
        %v2274 = vpop.f32.mrf.mxu0
        %v2275 = vadd.f32 %v2246, %v2274
        %2276 = vdwg.mxu0
        %2277 = vmatpush.msra.mxu0 0.0
        %2278 = vmatpush.msra.mxu0 0.0
        %2279 = vmatpush.msra.mxu0 0.0
        %2280 = vmatpush.msra.mxu0 0.0
        %2281 = vmatpush.msra.mxu0 0.0
        %2282 = vmatpush.msra.mxu0 0.0
        %2283 = vmatpush.msra.mxu0 0.0
        %2284 = vmatpush.msra.mxu0 0.0
        %2285 = vmatpush.msra.mxu0 0.0
        %2286 = vmatpush.msra.mxu0 0.0
        %2287 = vmatpush.msra.mxu0 0.0
        %2288 = vmatpush.msra.mxu0 0.0
        %2289 = vmatpush.msra.mxu0 %v2235
        %2290 = vmatpush.msra.mxu0 %v2233
        %2291 = vmatpush.msra.mxu0 %v2231
        %2292 = vmatpush.msra.mxu0 %v2229
        %2293 = vmatmul.f32.gmra.mxu0 %v2249
        %v2294 = vpop.f32.mrf.mxu0
        %v2295 = vadd.f32 %v2241, %v2294
        %2296 = vmatmul.f32.gmra.mxu0 %v2252
        %v2297 = vpop.f32.mrf.mxu0
        %v2298 = vadd.f32 %v2246, %v2297
        %2299 = vdwg.mxu0
        %v2300 = vand.u32 2147483647, %v2272
        %vm2301 = vcmp.le.f32.partialorder %v2300, 0.7853982
        %vm2302 = vcmp.lt.s32.totalorder %v2272, 0
        %v2303 = vand.u32 %v2272, 2139095040
        %v2304 = vshrl.u32 %v2303, 23
        %v2305 = vsub.s32 %v2304, 127
        %v2306 = vand.u32 2147483647, %v2272
        %v2307 = vand.u32 %v2306, 8388607
        %v2308 = vor.u32 %v2307, 8388608
        %v2309 = vsub.s32 0, %v2308
        %v2310 = vadd.s32 %v2305, 1
        %vm2311 = vcmp.gt.s32.totalorder %v2310, 0
        %v2312 = vsel %vm2311, %v2310, 0
        %v2313 = vshrl.u32 %v2312, 5
        %v2314 = vand.u32 %v2312, 31
        %v2315 = vsub.s32 32, %v2314
        %v2316 = vshrl.u32 683565275, %v2315
        %v2317 = vshll.u32 683565275, %v2314
        %v2318 = vshrl.u32 2475754826, %v2315
        %v2319 = vor.u32 %v2317, %v2318
        %v2320 = vshll.u32 2475754826, %v2314
        %v2321 = vshrl.u32 2131351028, %v2315
        %v2322 = vor.u32 %v2320, %v2321
        %v2323 = vshll.u32 2131351028, %v2314
        %v2324 = vshrl.u32 2102212464, %v2315
        %v2325 = vor.u32 %v2323, %v2324
        %v2326 = vshll.u32 2102212464, %v2314
        %v2327 = vshrl.u32 920167782, %v2315
        %v2328 = vor.u32 %v2326, %v2327
        %v2329 = vshll.u32 920167782, %v2314
        %v2330 = vshrl.u32 1326507024, %v2315
        %v2331 = vor.u32 %v2329, %v2330
        %vm2332 = vcmp.lt.s32.totalorder %v2313, 1
        %vm2333 = vcmp.lt.s32.totalorder %v2313, 2
        %vm2334 = vcmp.lt.s32.totalorder %v2313, 3
        %vm2335 = vcmp.lt.s32.totalorder %v2313, 4
        %v2336 = vsel %vm2332, %v2316, %v2319
        %v2337 = vsel %vm2335, %v2325, 2102212464
        %v2338 = vsel %vm2334, %v2322, %v2337
        %v2339 = vsel %vm2333, %v2336, %v2338
        %v2340 = vsel %vm2332, %v2319, %v2322
        %v2341 = vsel %vm2335, %v2328, 920167782
        %v2342 = vsel %vm2334, %v2325, %v2341
        %v2343 = vsel %vm2333, %v2340, %v2342
        %v2344 = vsel %vm2332, %v2322, %v2325
        %v2345 = vsel %vm2335, %v2331, 1326507024
        %v2346 = vsel %vm2334, %v2328, %v2345
        %v2347 = vsel %vm2333, %v2344, %v2346
        %v2348 = vshll.u32 %v2308, 8
        %v2349 = vand.u32 %v2348, 65535
        %v2350 = vshrl.u32 %v2348, 16
        %v2351 = vand.u32 %v2347, 65535
        %v2352 = vshrl.u32 %v2347, 16
        %v2353 = vmul.u32 %v2349, %v2351
        %v2354 = vmul.u32 %v2349, %v2352
        %v2355 = vmul.u32 %v2350, %v2351
        %v2356 = vmul.u32 %v2350, %v2352
        %v2357 = vshll.u32 %v2354, 16
        %v2358 = vshrl.u32 %v2354, 16
        %v2359 = vshll.u32 %v2355, 16
        %v2360 = vshrl.u32 %v2355, 16
        %vm2361 = vc.u32 %v2353, %v2357
        %v2362 = vsel %vm2361, 1, 0
        %v2363 = vadd.s32 %v2353, %v2357
        %v2364 = vadd.s32 %v2356, %v2362
        %vm2365 = vc.u32 %v2363, %v2359
        %v2366 = vsel %vm2365, 1, 0
        %v2367 = vadd.s32 %v2363, %v2359
        %v2368 = vadd.s32 %v2364, %v2366
        %v2369 = vadd.s32 %v2368, %v2358
        %v2370 = vadd.s32 %v2369, %v2360
        %v2371 = vand.u32 %v2348, 65535
        %v2372 = vshrl.u32 %v2348, 16
        %v2373 = vand.u32 %v2343, 65535
        %v2374 = vshrl.u32 %v2343, 16
        %v2375 = vmul.u32 %v2371, %v2373
        %v2376 = vmul.u32 %v2371, %v2374
        %v2377 = vmul.u32 %v2372, %v2373
        %v2378 = vmul.u32 %v2372, %v2374
        %v2379 = vshll.u32 %v2376, 16
        %v2380 = vshrl.u32 %v2376, 16
        %v2381 = vshll.u32 %v2377, 16
        %v2382 = vshrl.u32 %v2377, 16
        %vm2383 = vc.u32 %v2375, %v2379
        %v2384 = vsel %vm2383, 1, 0
        %v2385 = vadd.s32 %v2375, %v2379
        %v2386 = vadd.s32 %v2378, %v2384
        %vm2387 = vc.u32 %v2385, %v2381
        %v2388 = vsel %vm2387, 1, 0
        %v2389 = vadd.s32 %v2385, %v2381
        %v2390 = vadd.s32 %v2386, %v2388
        %v2391 = vadd.s32 %v2390, %v2380
        %v2392 = vadd.s32 %v2391, %v2382
        %v2393 = vmul.u32 %v2348, %v2339
        %v2394 = vadd.s32 %v2370, %v2389
        %vm2395 = vc.u32 %v2370, %v2389
        %v2396 = vadd.s32 %v2392, 1
        %v2397 = vsel %vm2395, %v2396, %v2392
        %v2398 = vadd.s32 %v2393, %v2397
        %v2399 = vadd.s32 %v2398, 536870912
        %v2400 = vshrl.u32 %v2399, 30
        %v2401 = vshll.u32 %v2400, 30
        %v2402 = vsub.s32 %v2398, %v2401
        %vm2403 = vcmp.lt.s32.totalorder %v2402, 0
        %v2404 = vsub.s32 0, %v2402
        %v2405 = vsel %vm2403, %v2404, %v2402
        %v2406 = vclz %v2405
        %v2407 = vsub.s32 %v2406, 2
        %vm2408 = vcmp.gt.s32.totalorder 0, %v2407
        %v2409 = vsel %vm2408, 0, %v2407
        %v2410 = vsub.s32 32, %v2409
        %v2411 = vshll.u32 %v2402, %v2409
        %v2412 = vshrl.u32 %v2394, %v2410
        %v2413 = vor.u32 %v2411, %v2412
        %v2414 = vsub.s32 4294967266, %v2409
        %v2415 = vadd.s32 %v2414, 127
        %v2416 = vshll.u32 %v2415, 23
        %v2417 = vor.u32 4788187, %v2416
        %v2418 = vand.u32 2147483647, %v2417
        %v2420 = vcvt.s32.f32 %v2413
        %v2421 = vmul.f32 %v2420, %v2418
        %v2422 = vxor.u32 %v2421, 2147483648
        %v2423 = vsel %vm2302, %v2422, %v2421
        %v2424 = vsub.s32 4, %v2400
        %v2425 = vsel %vm2302, %v2424, %v2400
        %v2426 = vsel %vm2301, %v2272, %v2423
        %v2427 = vsel %vm2301, 0, %v2425
        %v2428 = vmul.f32 %v2426, %v2426
        %v2429 = vmul.f32 %v2428, -0.001358992
        %v2430 = vadd.f32 %v2429, 0.041655596
        %v2431 = vmul.f32 %v2428, %v2430
        %v2432 = vadd.f32 %v2431, -0.4999988
        %v2433 = vmul.f32 %v2428, %v2432
        %v2434 = vadd.f32 1.0, %v2433
        %v2435 = vmul.f32 %v2426, %v2426
        %v2436 = vmul.f32 %v2435, -0.00019511016
        %v2437 = vadd.f32 %v2436, 0.008332121
        %v2438 = vmul.f32 %v2435, %v2437
        %v2439 = vadd.f32 %v2438, -0.16666654
        %v2440 = vmul.f32 %v2435, %v2439
        %v2441 = vadd.f32 %v2440, 1.0
        %v2442 = vmul.f32 %v2441, %v2426
        %vm2443 = vweird.f32 %v2272
        %v2444 = vand.u32 %v2427, 3
        %vm2445 = vcmp.lt.s32.totalorder %v2444, 2
        %vm2446 = vcmp.eq.s32.totalorder %v2444, 0
        %v2447 = vxor.u32 %v2442, 2147483648
        %v2448 = vsel %vm2446, %v2434, %v2447
        %vm2449 = vcmp.eq.s32.totalorder %v2444, 2
        %v2450 = vxor.u32 %v2434, 2147483648
        %v2451 = vsel %vm2449, %v2450, %v2442
        %v2452 = vsel %vm2445, %v2448, %v2451
        %v2453 = vsel %vm2443, nan, %v2452
        %v2454 = vand.u32 2147483647, %v2295
        %vm2455 = vcmp.le.f32.partialorder %v2454, 0.7853982
        %vm2456 = vcmp.lt.s32.totalorder %v2295, 0
        %v2457 = vand.u32 %v2295, 2139095040
        %v2458 = vshrl.u32 %v2457, 23
        %v2459 = vsub.s32 %v2458, 127
        %v2460 = vand.u32 2147483647, %v2295
        %v2461 = vand.u32 %v2460, 8388607
        %v2462 = vor.u32 %v2461, 8388608
        %v2463 = vsub.s32 0, %v2462
        %v2464 = vadd.s32 %v2459, 1
        %vm2465 = vcmp.gt.s32.totalorder %v2464, 0
        %v2466 = vsel %vm2465, %v2464, 0
        %v2467 = vshrl.u32 %v2466, 5
        %v2468 = vand.u32 %v2466, 31
        %v2469 = vsub.s32 32, %v2468
        %v2470 = vshrl.u32 683565275, %v2469
        %v2471 = vshll.u32 683565275, %v2468
        %v2472 = vshrl.u32 2475754826, %v2469
        %v2473 = vor.u32 %v2471, %v2472
        %v2474 = vshll.u32 2475754826, %v2468
        %v2475 = vshrl.u32 2131351028, %v2469
        %v2476 = vor.u32 %v2474, %v2475
        %v2477 = vshll.u32 2131351028, %v2468
        %v2478 = vshrl.u32 2102212464, %v2469
        %v2479 = vor.u32 %v2477, %v2478
        %v2480 = vshll.u32 2102212464, %v2468
        %v2481 = vshrl.u32 920167782, %v2469
        %v2482 = vor.u32 %v2480, %v2481
        %v2483 = vshll.u32 920167782, %v2468
        %v2484 = vshrl.u32 1326507024, %v2469
        %v2485 = vor.u32 %v2483, %v2484
        %vm2486 = vcmp.lt.s32.totalorder %v2467, 1
        %vm2487 = vcmp.lt.s32.totalorder %v2467, 2
        %vm2488 = vcmp.lt.s32.totalorder %v2467, 3
        %vm2489 = vcmp.lt.s32.totalorder %v2467, 4
        %v2490 = vsel %vm2486, %v2470, %v2473
        %v2491 = vsel %vm2489, %v2479, 2102212464
        %v2492 = vsel %vm2488, %v2476, %v2491
        %v2493 = vsel %vm2487, %v2490, %v2492
        %v2494 = vsel %vm2486, %v2473, %v2476
        %v2495 = vsel %vm2489, %v2482, 920167782
        %v2496 = vsel %vm2488, %v2479, %v2495
        %v2497 = vsel %vm2487, %v2494, %v2496
        %v2498 = vsel %vm2486, %v2476, %v2479
        %v2499 = vsel %vm2489, %v2485, 1326507024
        %v2500 = vsel %vm2488, %v2482, %v2499
        %v2501 = vsel %vm2487, %v2498, %v2500
        %v2502 = vshll.u32 %v2462, 8
        %v2503 = vand.u32 %v2502, 65535
        %v2504 = vshrl.u32 %v2502, 16
        %v2505 = vand.u32 %v2501, 65535
        %v2506 = vshrl.u32 %v2501, 16
        %v2507 = vmul.u32 %v2503, %v2505
        %v2508 = vmul.u32 %v2503, %v2506
        %v2509 = vmul.u32 %v2504, %v2505
        %v2510 = vmul.u32 %v2504, %v2506
        %v2511 = vshll.u32 %v2508, 16
        %v2512 = vshrl.u32 %v2508, 16
        %v2513 = vshll.u32 %v2509, 16
        %v2514 = vshrl.u32 %v2509, 16
        %vm2515 = vc.u32 %v2507, %v2511
        %v2516 = vsel %vm2515, 1, 0
        %v2517 = vadd.s32 %v2507, %v2511
        %v2518 = vadd.s32 %v2510, %v2516
        %vm2519 = vc.u32 %v2517, %v2513
        %v2520 = vsel %vm2519, 1, 0
        %v2521 = vadd.s32 %v2517, %v2513
        %v2522 = vadd.s32 %v2518, %v2520
        %v2523 = vadd.s32 %v2522, %v2512
        %v2524 = vadd.s32 %v2523, %v2514
        %v2525 = vand.u32 %v2502, 65535
        %v2526 = vshrl.u32 %v2502, 16
        %v2527 = vand.u32 %v2497, 65535
        %v2528 = vshrl.u32 %v2497, 16
        %v2529 = vmul.u32 %v2525, %v2527
        %v2530 = vmul.u32 %v2525, %v2528
        %v2531 = vmul.u32 %v2526, %v2527
        %v2532 = vmul.u32 %v2526, %v2528
        %v2533 = vshll.u32 %v2530, 16
        %v2534 = vshrl.u32 %v2530, 16
        %v2535 = vshll.u32 %v2531, 16
        %v2536 = vshrl.u32 %v2531, 16
        %vm2537 = vc.u32 %v2529, %v2533
        %v2538 = vsel %vm2537, 1, 0
        %v2539 = vadd.s32 %v2529, %v2533
        %v2540 = vadd.s32 %v2532, %v2538
        %vm2541 = vc.u32 %v2539, %v2535
        %v2542 = vsel %vm2541, 1, 0
        %v2543 = vadd.s32 %v2539, %v2535
        %v2544 = vadd.s32 %v2540, %v2542
        %v2545 = vadd.s32 %v2544, %v2534
        %v2546 = vadd.s32 %v2545, %v2536
        %v2547 = vmul.u32 %v2502, %v2493
        %v2548 = vadd.s32 %v2524, %v2543
        %vm2549 = vc.u32 %v2524, %v2543
        %v2550 = vadd.s32 %v2546, 1
        %v2551 = vsel %vm2549, %v2550, %v2546
        %v2552 = vadd.s32 %v2547, %v2551
        %v2553 = vadd.s32 %v2552, 536870912
        %v2554 = vshrl.u32 %v2553, 30
        %v2555 = vshll.u32 %v2554, 30
        %v2556 = vsub.s32 %v2552, %v2555
        %vm2557 = vcmp.lt.s32.totalorder %v2556, 0
        %v2558 = vsub.s32 0, %v2556
        %v2559 = vsel %vm2557, %v2558, %v2556
        %v2560 = vclz %v2559
        %v2561 = vsub.s32 %v2560, 2
        %vm2562 = vcmp.gt.s32.totalorder 0, %v2561
        %v2563 = vsel %vm2562, 0, %v2561
        %v2564 = vsub.s32 32, %v2563
        %v2565 = vshll.u32 %v2556, %v2563
        %v2566 = vshrl.u32 %v2548, %v2564
        %v2567 = vor.u32 %v2565, %v2566
        %v2568 = vsub.s32 4294967266, %v2563
        %v2569 = vadd.s32 %v2568, 127
        %v2570 = vshll.u32 %v2569, 23
        %v2571 = vor.u32 4788187, %v2570
        %v2572 = vand.u32 2147483647, %v2571
        %v2574 = vcvt.s32.f32 %v2567
        %v2575 = vmul.f32 %v2574, %v2572
        %v2576 = vxor.u32 %v2575, 2147483648
        %v2577 = vsel %vm2456, %v2576, %v2575
        %v2578 = vsub.s32 4, %v2554
        %v2579 = vsel %vm2456, %v2578, %v2554
        %v2580 = vsel %vm2455, %v2295, %v2577
        %v2581 = vsel %vm2455, 0, %v2579
        %v2582 = vmul.f32 %v2580, %v2580
        %v2583 = vmul.f32 %v2582, -0.001358992
        %v2584 = vadd.f32 %v2583, 0.041655596
        %v2585 = vmul.f32 %v2582, %v2584
        %v2586 = vadd.f32 %v2585, -0.4999988
        %v2587 = vmul.f32 %v2582, %v2586
        %v2588 = vadd.f32 1.0, %v2587
        %v2589 = vmul.f32 %v2580, %v2580
        %v2590 = vmul.f32 %v2589, -0.00019511016
        %v2591 = vadd.f32 %v2590, 0.008332121
        %v2592 = vmul.f32 %v2589, %v2591
        %v2593 = vadd.f32 %v2592, -0.16666654
        %v2594 = vmul.f32 %v2589, %v2593
        %v2595 = vadd.f32 %v2594, 1.0
        %v2596 = vmul.f32 %v2595, %v2580
        %vm2597 = vweird.f32 %v2295
        %v2598 = vand.u32 %v2581, 3
        %vm2599 = vcmp.lt.s32.totalorder %v2598, 2
        %vm2600 = vcmp.eq.s32.totalorder %v2598, 0
        %v2601 = vxor.u32 %v2596, 2147483648
        %v2602 = vsel %vm2600, %v2588, %v2601
        %vm2603 = vcmp.eq.s32.totalorder %v2598, 2
        %v2604 = vxor.u32 %v2588, 2147483648
        %v2605 = vsel %vm2603, %v2604, %v2596
        %v2606 = vsel %vm2599, %v2602, %v2605
        %v2607 = vsel %vm2597, nan, %v2606
        %v2608 = vand.u32 2147483647, %v2275
        %vm2609 = vcmp.le.f32.partialorder %v2608, 0.7853982
        %vm2610 = vcmp.lt.s32.totalorder %v2275, 0
        %v2611 = vand.u32 %v2275, 2139095040
        %v2612 = vshrl.u32 %v2611, 23
        %v2613 = vsub.s32 %v2612, 127
        %v2614 = vand.u32 2147483647, %v2275
        %v2615 = vand.u32 %v2614, 8388607
        %v2616 = vor.u32 %v2615, 8388608
        %v2617 = vsub.s32 0, %v2616
        %v2618 = vadd.s32 %v2613, 1
        %vm2619 = vcmp.gt.s32.totalorder %v2618, 0
        %v2620 = vsel %vm2619, %v2618, 0
        %v2621 = vshrl.u32 %v2620, 5
        %v2622 = vand.u32 %v2620, 31
        %v2623 = vsub.s32 32, %v2622
        %v2624 = vshrl.u32 683565275, %v2623
        %v2625 = vshll.u32 683565275, %v2622
        %v2626 = vshrl.u32 2475754826, %v2623
        %v2627 = vor.u32 %v2625, %v2626
        %v2628 = vshll.u32 2475754826, %v2622
        %v2629 = vshrl.u32 2131351028, %v2623
        %v2630 = vor.u32 %v2628, %v2629
        %v2631 = vshll.u32 2131351028, %v2622
        %v2632 = vshrl.u32 2102212464, %v2623
        %v2633 = vor.u32 %v2631, %v2632
        %v2634 = vshll.u32 2102212464, %v2622
        %v2635 = vshrl.u32 920167782, %v2623
        %v2636 = vor.u32 %v2634, %v2635
        %v2637 = vshll.u32 920167782, %v2622
        %v2638 = vshrl.u32 1326507024, %v2623
        %v2639 = vor.u32 %v2637, %v2638
        %vm2640 = vcmp.lt.s32.totalorder %v2621, 1
        %vm2641 = vcmp.lt.s32.totalorder %v2621, 2
        %vm2642 = vcmp.lt.s32.totalorder %v2621, 3
        %vm2643 = vcmp.lt.s32.totalorder %v2621, 4
        %v2644 = vsel %vm2640, %v2624, %v2627
        %v2645 = vsel %vm2643, %v2633, 2102212464
        %v2646 = vsel %vm2642, %v2630, %v2645
        %v2647 = vsel %vm2641, %v2644, %v2646
        %v2648 = vsel %vm2640, %v2627, %v2630
        %v2649 = vsel %vm2643, %v2636, 920167782
        %v2650 = vsel %vm2642, %v2633, %v2649
        %v2651 = vsel %vm2641, %v2648, %v2650
        %v2652 = vsel %vm2640, %v2630, %v2633
        %v2653 = vsel %vm2643, %v2639, 1326507024
        %v2654 = vsel %vm2642, %v2636, %v2653
        %v2655 = vsel %vm2641, %v2652, %v2654
        %v2656 = vshll.u32 %v2616, 8
        %v2657 = vand.u32 %v2656, 65535
        %v2658 = vshrl.u32 %v2656, 16
        %v2659 = vand.u32 %v2655, 65535
        %v2660 = vshrl.u32 %v2655, 16
        %v2661 = vmul.u32 %v2657, %v2659
        %v2662 = vmul.u32 %v2657, %v2660
        %v2663 = vmul.u32 %v2658, %v2659
        %v2664 = vmul.u32 %v2658, %v2660
        %v2665 = vshll.u32 %v2662, 16
        %v2666 = vshrl.u32 %v2662, 16
        %v2667 = vshll.u32 %v2663, 16
        %v2668 = vshrl.u32 %v2663, 16
        %vm2669 = vc.u32 %v2661, %v2665
        %v2670 = vsel %vm2669, 1, 0
        %v2671 = vadd.s32 %v2661, %v2665
        %v2672 = vadd.s32 %v2664, %v2670
        %vm2673 = vc.u32 %v2671, %v2667
        %v2674 = vsel %vm2673, 1, 0
        %v2675 = vadd.s32 %v2671, %v2667
        %v2676 = vadd.s32 %v2672, %v2674
        %v2677 = vadd.s32 %v2676, %v2666
        %v2678 = vadd.s32 %v2677, %v2668
        %v2679 = vand.u32 %v2656, 65535
        %v2680 = vshrl.u32 %v2656, 16
        %v2681 = vand.u32 %v2651, 65535
        %v2682 = vshrl.u32 %v2651, 16
        %v2683 = vmul.u32 %v2679, %v2681
        %v2684 = vmul.u32 %v2679, %v2682
        %v2685 = vmul.u32 %v2680, %v2681
        %v2686 = vmul.u32 %v2680, %v2682
        %v2687 = vshll.u32 %v2684, 16
        %v2688 = vshrl.u32 %v2684, 16
        %v2689 = vshll.u32 %v2685, 16
        %v2690 = vshrl.u32 %v2685, 16
        %vm2691 = vc.u32 %v2683, %v2687
        %v2692 = vsel %vm2691, 1, 0
        %v2693 = vadd.s32 %v2683, %v2687
        %v2694 = vadd.s32 %v2686, %v2692
        %vm2695 = vc.u32 %v2693, %v2689
        %v2696 = vsel %vm2695, 1, 0
        %v2697 = vadd.s32 %v2693, %v2689
        %v2698 = vadd.s32 %v2694, %v2696
        %v2699 = vadd.s32 %v2698, %v2688
        %v2700 = vadd.s32 %v2699, %v2690
        %v2701 = vmul.u32 %v2656, %v2647
        %v2702 = vadd.s32 %v2678, %v2697
        %vm2703 = vc.u32 %v2678, %v2697
        %v2704 = vadd.s32 %v2700, 1
        %v2705 = vsel %vm2703, %v2704, %v2700
        %v2706 = vadd.s32 %v2701, %v2705
        %v2707 = vadd.s32 %v2706, 536870912
        %v2708 = vshrl.u32 %v2707, 30
        %v2709 = vshll.u32 %v2708, 30
        %v2710 = vsub.s32 %v2706, %v2709
        %vm2711 = vcmp.lt.s32.totalorder %v2710, 0
        %v2712 = vsub.s32 0, %v2710
        %v2713 = vsel %vm2711, %v2712, %v2710
        %v2714 = vclz %v2713
        %v2715 = vsub.s32 %v2714, 2
        %vm2716 = vcmp.gt.s32.totalorder 0, %v2715
        %v2717 = vsel %vm2716, 0, %v2715
        %v2718 = vsub.s32 32, %v2717
        %v2719 = vshll.u32 %v2710, %v2717
        %v2720 = vshrl.u32 %v2702, %v2718
        %v2721 = vor.u32 %v2719, %v2720
        %v2722 = vsub.s32 4294967266, %v2717
        %v2723 = vadd.s32 %v2722, 127
        %v2724 = vshll.u32 %v2723, 23
        %v2725 = vor.u32 4788187, %v2724
        %v2726 = vand.u32 2147483647, %v2725
        %v2728 = vcvt.s32.f32 %v2721
        %v2729 = vmul.f32 %v2728, %v2726
        %v2730 = vxor.u32 %v2729, 2147483648
        %v2731 = vsel %vm2610, %v2730, %v2729
        %v2732 = vsub.s32 4, %v2708
        %v2733 = vsel %vm2610, %v2732, %v2708
        %v2734 = vsel %vm2609, %v2275, %v2731
        %v2735 = vsel %vm2609, 0, %v2733
        %v2736 = vmul.f32 %v2734, %v2734
        %v2737 = vmul.f32 %v2736, -0.001358992
        %v2738 = vadd.f32 %v2737, 0.041655596
        %v2739 = vmul.f32 %v2736, %v2738
        %v2740 = vadd.f32 %v2739, -0.4999988
        %v2741 = vmul.f32 %v2736, %v2740
        %v2742 = vadd.f32 1.0, %v2741
        %v2743 = vmul.f32 %v2734, %v2734
        %v2744 = vmul.f32 %v2743, -0.00019511016
        %v2745 = vadd.f32 %v2744, 0.008332121
        %v2746 = vmul.f32 %v2743, %v2745
        %v2747 = vadd.f32 %v2746, -0.16666654
        %v2748 = vmul.f32 %v2743, %v2747
        %v2749 = vadd.f32 %v2748, 1.0
        %v2750 = vmul.f32 %v2749, %v2734
        %vm2751 = vweird.f32 %v2275
        %v2752 = vand.u32 %v2735, 3
        %vm2753 = vcmp.lt.s32.totalorder %v2752, 2
        %vm2754 = vcmp.eq.s32.totalorder %v2752, 0
        %v2755 = vxor.u32 %v2750, 2147483648
        %v2756 = vsel %vm2754, %v2742, %v2755
        %vm2757 = vcmp.eq.s32.totalorder %v2752, 2
        %v2758 = vxor.u32 %v2742, 2147483648
        %v2759 = vsel %vm2757, %v2758, %v2750
        %v2760 = vsel %vm2753, %v2756, %v2759
        %v2761 = vsel %vm2751, nan, %v2760
        %v2762 = vand.u32 2147483647, %v2298
        %vm2763 = vcmp.le.f32.partialorder %v2762, 0.7853982
        %vm2764 = vcmp.lt.s32.totalorder %v2298, 0
        %v2765 = vand.u32 %v2298, 2139095040
        %v2766 = vshrl.u32 %v2765, 23
        %v2767 = vsub.s32 %v2766, 127
        %v2768 = vand.u32 2147483647, %v2298
        %v2769 = vand.u32 %v2768, 8388607
        %v2770 = vor.u32 %v2769, 8388608
        %v2771 = vsub.s32 0, %v2770
        %v2772 = vadd.s32 %v2767, 1
        %vm2773 = vcmp.gt.s32.totalorder %v2772, 0
        %v2774 = vsel %vm2773, %v2772, 0
        %v2775 = vshrl.u32 %v2774, 5
        %v2776 = vand.u32 %v2774, 31
        %v2777 = vsub.s32 32, %v2776
        %v2778 = vshrl.u32 683565275, %v2777
        %v2779 = vshll.u32 683565275, %v2776
        %v2780 = vshrl.u32 2475754826, %v2777
        %v2781 = vor.u32 %v2779, %v2780
        %v2782 = vshll.u32 2475754826, %v2776
        %v2783 = vshrl.u32 2131351028, %v2777
        %v2784 = vor.u32 %v2782, %v2783
        %v2785 = vshll.u32 2131351028, %v2776
        %v2786 = vshrl.u32 2102212464, %v2777
        %v2787 = vor.u32 %v2785, %v2786
        %v2788 = vshll.u32 2102212464, %v2776
        %v2789 = vshrl.u32 920167782, %v2777
        %v2790 = vor.u32 %v2788, %v2789
        %v2791 = vshll.u32 920167782, %v2776
        %v2792 = vshrl.u32 1326507024, %v2777
        %v2793 = vor.u32 %v2791, %v2792
        %vm2794 = vcmp.lt.s32.totalorder %v2775, 1
        %vm2795 = vcmp.lt.s32.totalorder %v2775, 2
        %vm2796 = vcmp.lt.s32.totalorder %v2775, 3
        %vm2797 = vcmp.lt.s32.totalorder %v2775, 4
        %v2798 = vsel %vm2794, %v2778, %v2781
        %v2799 = vsel %vm2797, %v2787, 2102212464
        %v2800 = vsel %vm2796, %v2784, %v2799
        %v2801 = vsel %vm2795, %v2798, %v2800
        %v2802 = vsel %vm2794, %v2781, %v2784
        %v2803 = vsel %vm2797, %v2790, 920167782
        %v2804 = vsel %vm2796, %v2787, %v2803
        %v2805 = vsel %vm2795, %v2802, %v2804
        %v2806 = vsel %vm2794, %v2784, %v2787
        %v2807 = vsel %vm2797, %v2793, 1326507024
        %v2808 = vsel %vm2796, %v2790, %v2807
        %v2809 = vsel %vm2795, %v2806, %v2808
        %v2810 = vshll.u32 %v2770, 8
        %v2811 = vand.u32 %v2810, 65535
        %v2812 = vshrl.u32 %v2810, 16
        %v2813 = vand.u32 %v2809, 65535
        %v2814 = vshrl.u32 %v2809, 16
        %v2815 = vmul.u32 %v2811, %v2813
        %v2816 = vmul.u32 %v2811, %v2814
        %v2817 = vmul.u32 %v2812, %v2813
        %v2818 = vmul.u32 %v2812, %v2814
        %v2819 = vshll.u32 %v2816, 16
        %v2820 = vshrl.u32 %v2816, 16
        %v2821 = vshll.u32 %v2817, 16
        %v2822 = vshrl.u32 %v2817, 16
        %vm2823 = vc.u32 %v2815, %v2819
        %v2824 = vsel %vm2823, 1, 0
        %v2825 = vadd.s32 %v2815, %v2819
        %v2826 = vadd.s32 %v2818, %v2824
        %vm2827 = vc.u32 %v2825, %v2821
        %v2828 = vsel %vm2827, 1, 0
        %v2829 = vadd.s32 %v2825, %v2821
        %v2830 = vadd.s32 %v2826, %v2828
        %v2831 = vadd.s32 %v2830, %v2820
        %v2832 = vadd.s32 %v2831, %v2822
        %v2833 = vand.u32 %v2810, 65535
        %v2834 = vshrl.u32 %v2810, 16
        %v2835 = vand.u32 %v2805, 65535
        %v2836 = vshrl.u32 %v2805, 16
        %v2837 = vmul.u32 %v2833, %v2835
        %v2838 = vmul.u32 %v2833, %v2836
        %v2839 = vmul.u32 %v2834, %v2835
        %v2840 = vmul.u32 %v2834, %v2836
        %v2841 = vshll.u32 %v2838, 16
        %v2842 = vshrl.u32 %v2838, 16
        %v2843 = vshll.u32 %v2839, 16
        %v2844 = vshrl.u32 %v2839, 16
        %vm2845 = vc.u32 %v2837, %v2841
        %v2846 = vsel %vm2845, 1, 0
        %v2847 = vadd.s32 %v2837, %v2841
        %v2848 = vadd.s32 %v2840, %v2846
        %vm2849 = vc.u32 %v2847, %v2843
        %v2850 = vsel %vm2849, 1, 0
        %v2851 = vadd.s32 %v2847, %v2843
        %v2852 = vadd.s32 %v2848, %v2850
        %v2853 = vadd.s32 %v2852, %v2842
        %v2854 = vadd.s32 %v2853, %v2844
        %v2855 = vmul.u32 %v2810, %v2801
        %v2856 = vadd.s32 %v2832, %v2851
        %vm2857 = vc.u32 %v2832, %v2851
        %v2858 = vadd.s32 %v2854, 1
        %v2859 = vsel %vm2857, %v2858, %v2854
        %v2860 = vadd.s32 %v2855, %v2859
        %v2861 = vadd.s32 %v2860, 536870912
        %v2862 = vshrl.u32 %v2861, 30
        %v2863 = vshll.u32 %v2862, 30
        %v2864 = vsub.s32 %v2860, %v2863
        %vm2865 = vcmp.lt.s32.totalorder %v2864, 0
        %v2866 = vsub.s32 0, %v2864
        %v2867 = vsel %vm2865, %v2866, %v2864
        %v2868 = vclz %v2867
        %v2869 = vsub.s32 %v2868, 2
        %vm2870 = vcmp.gt.s32.totalorder 0, %v2869
        %v2871 = vsel %vm2870, 0, %v2869
        %v2872 = vsub.s32 32, %v2871
        %v2873 = vshll.u32 %v2864, %v2871
        %v2874 = vshrl.u32 %v2856, %v2872
        %v2875 = vor.u32 %v2873, %v2874
        %v2876 = vsub.s32 4294967266, %v2871
        %v2877 = vadd.s32 %v2876, 127
        %v2878 = vshll.u32 %v2877, 23
        %v2879 = vor.u32 4788187, %v2878
        %v2880 = vand.u32 2147483647, %v2879
        %v2882 = vcvt.s32.f32 %v2875
        %v2883 = vmul.f32 %v2882, %v2880
        %v2884 = vxor.u32 %v2883, 2147483648
        %v2885 = vsel %vm2764, %v2884, %v2883
        %v2886 = vsub.s32 4, %v2862
        %v2887 = vsel %vm2764, %v2886, %v2862
        %v2888 = vsel %vm2763, %v2298, %v2885
        %v2889 = vsel %vm2763, 0, %v2887
        %v2890 = vmul.f32 %v2888, %v2888
        %v2891 = vmul.f32 %v2890, -0.001358992
        %v2892 = vadd.f32 %v2891, 0.041655596
        %v2893 = vmul.f32 %v2890, %v2892
        %v2894 = vadd.f32 %v2893, -0.4999988
        %v2895 = vmul.f32 %v2890, %v2894
        %v2896 = vadd.f32 1.0, %v2895
        %v2897 = vmul.f32 %v2888, %v2888
        %v2898 = vmul.f32 %v2897, -0.00019511016
        %v2899 = vadd.f32 %v2898, 0.008332121
        %v2900 = vmul.f32 %v2897, %v2899
        %v2901 = vadd.f32 %v2900, -0.16666654
        %v2902 = vmul.f32 %v2897, %v2901
        %v2903 = vadd.f32 %v2902, 1.0
        %v2904 = vmul.f32 %v2903, %v2888
        %vm2905 = vweird.f32 %v2298
        %v2906 = vand.u32 %v2889, 3
        %vm2907 = vcmp.lt.s32.totalorder %v2906, 2
        %vm2908 = vcmp.eq.s32.totalorder %v2906, 0
        %v2909 = vxor.u32 %v2904, 2147483648
        %v2910 = vsel %vm2908, %v2896, %v2909
        %vm2911 = vcmp.eq.s32.totalorder %v2906, 2
        %v2912 = vxor.u32 %v2896, 2147483648
        %v2913 = vsel %vm2911, %v2912, %v2904
        %v2914 = vsel %vm2907, %v2910, %v2913
        %v2915 = vsel %vm2905, nan, %v2914
        %2916 = vst [vmem:[%s302] sm:$0xff] %v2453
        %2917 = vst [vmem:[%s302 + $0x8] sm:$0xff] %v2607
        %2918 = vst [vmem:[%s302 + $0x10] sm:$0xff] %v2761
        %2919 = vst [vmem:[%s302 + $0x18] sm:$0xff] %v2915
        %s2920 = sand.u32 %s181, 1
        %s2921 = scalar_lea.sflag [#allocation4], %s2920
        %s2922 = sand.u32 %s181, 1
        %s2923 = smul.addr %s2922, 32
        %s2924 = scalar_lea.vmem [#allocation3], %s2923
        // Predicated region
        $region72: #{tpu_custom_call.1} parent=66 // pred_check
          %p2925 = pneg %p191
        $region73: #{tpu_custom_call.1} parent=66 // pred_check_branch
          %2927 = sbr.rel (%p2925) target = $region75
        $region74: #{tpu_custom_call.1} parent=66 // pred_region
          %s2928 = smul.u32 2, %s21
          %2930 = vsyncadd %s2921, 0
          %s2931 = smul.addr %s2928, 8
          %s2932 = scalar_lea.hbm %s7, %s2931
          %s2933 = sshll.u32 %s2924, 4
          %s2934 = int_to_ptr.vmem [resolvable:$true] %s2933
          %s2935 = sshll.u32 %s2932, 4
          %s2936 = int_to_ptr.hbm [resolvable:$true] %s2935
          %2941 = dma.vmem_to_hbm [thread:$0]  %s2934, 512, %s2936, %s2921, 256, 512, 16
        $region75: #{tpu_custom_call.1} parent=66 // pred_fallthru
          _
      $region67: #{tpu_custom_call.1} parent=5 // pred_fallthru
        _
      %p2942 = scmp.le.s32.totalorder 2, %s16
      // Predicated region
      $region76: #{tpu_custom_call.1} parent=5 // pred_check
        %p2943 = pneg %p2942
      $region77: #{tpu_custom_call.1} parent=5 // pred_check_branch
        %2945 = sbr.rel (%p2943) target = $region79
      $region78: #{tpu_custom_call.1} parent=5 // pred_region
        %s2946 = ssub.s32 %s16, 2
        // Predicated region
        $region80: #{tpu_custom_call.1} parent=78 // pred_check
          %p2947 = pneg %p197
        $region81: #{tpu_custom_call.1} parent=78 // pred_check_branch
          %2949 = sbr.rel (%p2947) target = $region83
        $region82: #{tpu_custom_call.1} parent=78 // pred_region
          %s2950 = sand.u32 %s182, 1
          %s2951 = scalar_lea.sflag [#allocation4], %s2950
          %s2952 = sand.u32 %s182, 1
          %s2953 = smul.addr %s2952, 32
          %s2954 = scalar_lea.vmem [#allocation3], %s2953
          %2956 = dma.done %s2951, 512
        $region83: #{tpu_custom_call.1} parent=78 // pred_fallthru
          _
      $region79: #{tpu_custom_call.1} parent=5 // pred_fallthru
        _
    $region6: #{tpu_custom_call.1} parent=1 // loop_footer
      %s20 = sadd.s32 1, %s16
    $region7: #{tpu_custom_call.1} parent=1 // loop_footer_branch
      %15 = sbr.rel target = $region3
    $region8: #{tpu_custom_call.1} parent=1 // loop_exit
      _
    %2957 = vsyncpa [#allocation4], 1
    %s2958 = scalar_lea.sflag [#allocation4], 1
    %2959 = vsyncpa %s2958, 1

</llo_original>
